<compile_context>
chip_gen: v7x
topology: tpu7x:2x2x1
jax: 0.10.0
libtpu: 0.0.40
codegen_flags: <defaults>
</compile_context>

<pallas_src>
import functools

import jax
import jax.numpy as jnp
from jax.experimental import pallas as pl
from jax.experimental.pallas import tpu as pltpu

LANE = 128      # lane width (last-dim tiling granularity)
SUBLANE = 8     # f32 sublane granularity (second-to-last dim)


def _round_up(n, m):
    return ((n + m - 1) // m) * m


def _cdiv(a, b):
    return -(-a // b)


# ----------------------------- Pallas kernel --------------------------------
def _actor_kernel(scale_ref,
                  x_ref,
                  w1_ref, b1_ref,
                  w2_ref, b2_ref,
                  w2a_ref, b2a_ref,
                  w3_ref, b3_ref,
                  o_ref):
    scale = scale_ref[0, 0]          # max_action (SMEM scalar)
    x = x_ref[...]                   # [tile, state_dim] f32

    # Weights are bf16; cast activations to bf16 for the native MXU path and
    # accumulate in f32 (preferred_element_type).
    h = jnp.dot(x.astype(jnp.bfloat16), w1_ref[...],
                preferred_element_type=jnp.float32) + b1_ref[...]
    h = jnp.maximum(h, 0.0)

    h = jnp.dot(h.astype(jnp.bfloat16), w2_ref[...],
                preferred_element_type=jnp.float32) + b2_ref[...]
    h = jnp.maximum(h, 0.0)

    h = jnp.dot(h.astype(jnp.bfloat16), w2a_ref[...],
                preferred_element_type=jnp.float32) + b2a_ref[...]
    h = jnp.maximum(h, 0.0)

    h = jnp.dot(h.astype(jnp.bfloat16), w3_ref[...],
                preferred_element_type=jnp.float32) + b3_ref[...]
    o_ref[...] = scale * jnp.tanh(h)


# ------------------------------- wrappers ------------------------------------
@functools.partial(jax.jit, static_argnames=("action_dim", "row_tile"))
def actor_net_apply(xs, prep, max_action, *, action_dim, row_tile=1024):
    """Batched actor forward: xs [N, state_dim] -> [N, action_dim] (f32)."""
    xs = jnp.asarray(xs, jnp.float32)
    n, state_dim = xs.shape
    out_pad = prep["w3"].shape[1]    # lane-padded output width (static)

    # Balanced tiling: split N as evenly as possible over the fewest steps that
    # keep the tile <= row_tile, pad only the remainder up to a sublane
    # multiple.  Even step counts (>1) keep both v7x TensorCores busy.
    num_steps = max(1, _cdiv(n, row_tile))
    if num_steps > 1 and num_steps % 2 == 1:
        num_steps += 1
    tile = _round_up(_cdiv(n, num_steps), SUBLANE)
    n_pad = num_steps * tile
    if n_pad != n:
        xs = jnp.pad(xs, ((0, n_pad - n), (0, 0)))

    scale = jnp.asarray(max_action, jnp.float32).reshape(1, 1)

    # Weights/biases: constant block index -> fetched once, VMEM-resident
    # across all grid steps (~1 MiB total in bf16 for the default sizes).
    def const_spec(arr):
        return pl.BlockSpec(arr.shape, lambda i: (0, 0))

    out = pl.pallas_call(
        _actor_kernel,
        out_shape=jax.ShapeDtypeStruct((n_pad, out_pad), jnp.float32),
        grid=(num_steps,),
        in_specs=[
            pl.BlockSpec((1, 1), lambda i: (0, 0),
                         memory_space=pltpu.MemorySpace.SMEM),      # max_action
            pl.BlockSpec((tile, state_dim), lambda i: (i, 0)),      # x rows
            const_spec(prep["w1"]), const_spec(prep["b1"]),
            const_spec(prep["w2"]), const_spec(prep["b2"]),
            const_spec(prep["w2a"]), const_spec(prep["b2a"]),
            const_spec(prep["w3"]), const_spec(prep["b3"]),
        ],
        out_specs=pl.BlockSpec((tile, out_pad), lambda i: (i, 0)),
        compiler_params=pltpu.CompilerParams(
            dimension_semantics=("parallel",),        # megacore sharding on v7x
            vmem_limit_bytes=32 * 1024 * 1024),       # explicit, safe on v5e..v7x
    )(scale, xs,
      prep["w1"], prep["b1"], prep["w2"], prep["b2"],
      prep["w2a"], prep["b2a"], prep["w3"], prep["b3"])

    return out[:n, :action_dim]


def actor_net_forward(x, prep, max_action, *, action_dim):
    """Mirrors ActorNet.forward: single state -> flat (action_dim,) vector."""
    xv = jnp.asarray(x, jnp.float32).reshape(1, -1)
    return actor_net_apply(xv, prep, max_action, action_dim=action_dim)[0]


# -------------------------- parameter preparation ----------------------------
def init_params(key, state_dim, action_dim):
    """nn.Linear-style init (uniform +-1/sqrt(fan_in)); weights as [in, out]."""
    def linear(key, fan_in, fan_out):
        kw, kb = jax.random.split(key)
        bound = 1.0 / jnp.sqrt(fan_in)
        w = jax.random.uniform(kw, (fan_in, fan_out), jnp.float32, -bound, bound)
        b = jax.random.uniform(kb, (1, fan_out), jnp.float32, -bound, bound)
        return w, b

    k1, k2, k3, k4 = jax.random.split(key, 4)
    w1, b1 = linear(k1, state_dim, 400)
    w2, b2 = linear(k2, 400, 400)
    w2a, b2a = linear(k3, 400, 300)
    w3, b3 = linear(k4, 300, action_dim)
    return {"w1": w1, "b1": b1, "w2": w2, "b2": b2,
            "w2a": w2a, "b2a": b2a, "w3": w3, "b3": b3}


def prepare_params(params):
    """Zero-pad hidden/output dims to lane multiples, cast weights to bf16.

    Padded sizes are derived from the actual weight shapes (no hard-coded
    constants).  Padding is exact: padded columns get zero weight + zero bias
    (ReLU(0)=0) and the matching padded rows of the next weight are zero.
    """
    def pad_to(a, rows, cols):
        r, c = a.shape
        assert rows >= r and cols >= c, "padded size smaller than actual"
        return jnp.pad(a, ((0, rows - r), (0, cols - c)))

    state_dim, h1 = params["w1"].shape
    _, h2 = params["w2"].shape
    _, h3 = params["w2a"].shape
    _, adim = params["w3"].shape
    H1 = _round_up(h1, LANE)
    H2 = _round_up(h2, LANE)
    H3 = _round_up(h3, LANE)
    OUT = _round_up(adim, LANE)

    return {
        "w1": pad_to(params["w1"], state_dim, H1).astype(jnp.bfloat16),
        "b1": pad_to(params["b1"], 1, H1),                       # biases stay f32
        "w2": pad_to(params["w2"], H1, H2).astype(jnp.bfloat16),
        "b2": pad_to(params["b2"], 1, H2),
        "w2a": pad_to(params["w2a"], H2, H3).astype(jnp.bfloat16),
        "b2a": pad_to(params["b2a"], 1, H3),
        "w3": pad_to(params["w3"], H3, OUT).astype(jnp.bfloat16),
        "b3": pad_to(params["b3"], 1, OUT),
    }


# ----------------------------------- main ------------------------------------
if __name__ == "__main__":
    state_dim = 16    # args.state_dim
    action_dim = 8    # args.z_dim
    max_action = 2.0  # args.max_action
    batch = 4

    key = jax.random.PRNGKey(0)
    k_params, k_x = jax.random.split(key)

    params = init_params(k_params, state_dim, action_dim)
    prep = prepare_params(params)

    xs = jax.random.normal(k_x, (batch, state_dim), dtype=jnp.float32)

    # Batched forward (the fast path).
    out = jax.block_until_ready(
        actor_net_apply(xs, prep, max_action, action_dim=action_dim))
    assert out.shape == (batch, action_dim)

    # Single-state forward matching the torch module's semantics.
    single = jax.block_until_ready(
        actor_net_forward(xs[0], prep, max_action, action_dim=action_dim))
    assert single.shape == (action_dim,)

    # Exercise the balanced-tile path with an awkward batch size as well.
    xs_big = jax.random.normal(jax.random.PRNGKey(1), (260, state_dim),
                               dtype=jnp.float32)
    out_big = jax.block_until_ready(
        actor_net_apply(xs_big, prep, max_action, action_dim=action_dim,
                        row_tile=256))
    assert out_big.shape == (260, action_dim)

    # Tight reference: identical bf16-weight math in plain JAX.
    def ref_bf16(h):
        h = jnp.maximum(jnp.dot(h.astype(jnp.bfloat16), prep["w1"],
                                preferred_element_type=jnp.float32) + prep["b1"], 0.0)
        h = jnp.maximum(jnp.dot(h.astype(jnp.bfloat16), prep["w2"],
                                preferred_element_type=jnp.float32) + prep["b2"], 0.0)
        h = jnp.maximum(jnp.dot(h.astype(jnp.bfloat16), prep["w2a"],
                                preferred_element_type=jnp.float32) + prep["b2a"], 0.0)
        z = jnp.dot(h.astype(jnp.bfloat16), prep["w3"],
                    preferred_element_type=jnp.float32) + prep["b3"]
        return (max_action * jnp.tanh(z))[:, :action_dim]

    expected_bf16 = jax.block_until_ready(ref_bf16(xs))
    assert jnp.allclose(out, expected_bf16, atol=2e-3, rtol=2e-3), \
        "mismatch vs bf16 reference"

    expected_big = jax.block_until_ready(ref_bf16(xs_big))
    assert jnp.allclose(out_big, expected_big, atol=2e-3, rtol=2e-3), \
        "mismatch vs bf16 reference (balanced-tile path)"

    # Loose sanity check against the original f32 semantics (bf16 weight error).
    def ref_f32(h):
        h = jnp.maximum(h @ params["w1"] + params["b1"], 0.0)
        h = jnp.maximum(h @ params["w2"] + params["b2"], 0.0)
        h = jnp.maximum(h @ params["w2a"] + params["b2a"], 0.0)
        return max_action * jnp.tanh(h @ params["w3"] + params["b3"])

    expected_f32 = jax.block_until_ready(ref_f32(xs))
    assert jnp.allclose(out, expected_f32, atol=1e-1, rtol=1e-1), \
        "mismatch vs f32 reference"
    assert jnp.allclose(single, out[0], atol=1e-5), "batch-1 path mismatch"

    print("KERNEL_OK")
</pallas_src>

<mosaic_0001>
module attributes {stable_mosaic.version = 11 : i64} {
  func.func @_actor_kernel(%arg0: i32, %arg1: memref<1x1xf32, #tpu.memory_space<smem>>, %arg2: memref<8x16xf32, #tpu.memory_space<vmem>>, %arg3: memref<16x512xbf16, #tpu.memory_space<vmem>>, %arg4: memref<1x512xf32, #tpu.memory_space<vmem>>, %arg5: memref<512x512xbf16, #tpu.memory_space<vmem>>, %arg6: memref<1x512xf32, #tpu.memory_space<vmem>>, %arg7: memref<512x384xbf16, #tpu.memory_space<vmem>>, %arg8: memref<1x384xf32, #tpu.memory_space<vmem>>, %arg9: memref<384x128xbf16, #tpu.memory_space<vmem>>, %arg10: memref<1x128xf32, #tpu.memory_space<vmem>>, %arg11: memref<8x128xf32, #tpu.memory_space<vmem>>) attributes {dimension_semantics = [#tpu.dimension_semantics<parallel>], iteration_bounds = array<i64: 1>, scalar_prefetch = 0 : i64, scratch_operands = 0 : i64, tpu.core_type = #tpu.core_type<tc>, window_params = [{transform_indices = @transform_0, window_bounds = array<i64: 1, 1>}, {transform_indices = @transform_1, window_bounds = array<i64: 8, 16>}, {pipeline_mode = #tpu.pipeline_mode<synchronous>, transform_indices = @transform_2, window_bounds = array<i64: 16, 512>}, {pipeline_mode = #tpu.pipeline_mode<synchronous>, transform_indices = @transform_3, window_bounds = array<i64: 1, 512>}, {pipeline_mode = #tpu.pipeline_mode<synchronous>, transform_indices = @transform_4, window_bounds = array<i64: 512, 512>}, {pipeline_mode = #tpu.pipeline_mode<synchronous>, transform_indices = @transform_5, window_bounds = array<i64: 1, 512>}, {pipeline_mode = #tpu.pipeline_mode<synchronous>, transform_indices = @transform_6, window_bounds = array<i64: 512, 384>}, {pipeline_mode = #tpu.pipeline_mode<synchronous>, transform_indices = @transform_7, window_bounds = array<i64: 1, 384>}, {pipeline_mode = #tpu.pipeline_mode<synchronous>, transform_indices = @transform_8, window_bounds = array<i64: 384, 128>}, {pipeline_mode = #tpu.pipeline_mode<synchronous>, transform_indices = @transform_9, window_bounds = array<i64: 1, 128>}, {transform_indices = @transform_10, window_bounds = array<i64: 8, 128>}]} {
    %c0 = arith.constant 0 : index
    %c0_0 = arith.constant 0 : index
    %0 = memref.load %arg1[%c0, %c0_0] : memref<1x1xf32, #tpu.memory_space<smem>>
    %c0_1 = arith.constant 0 : index
    %c0_2 = arith.constant 0 : index
    %1 = vector.load %arg2[%c0_1, %c0_2] : memref<8x16xf32, #tpu.memory_space<vmem>>, vector<8x16xf32>
    %2 = arith.truncf %1 : vector<8x16xf32> to vector<8x16xbf16>
    %c0_3 = arith.constant 0 : index
    %c0_4 = arith.constant 0 : index
    %3 = vector.load %arg3[%c0_3, %c0_4] : memref<16x512xbf16, #tpu.memory_space<vmem>>, vector<16x512xbf16>
    %cst = arith.constant dense<0.000000e+00> : vector<8x512xf32>
    %4 = tpu.matmul %2, %3, %cst {dimension_numbers = #tpu.dot_dimension_numbers<[1], [0], [0], [1], [0, 0, 1, 1], [], []>} : vector<8x16xbf16>, vector<16x512xbf16>, vector<8x512xf32> -> vector<8x512xf32>
    %c0_5 = arith.constant 0 : index
    %c0_6 = arith.constant 0 : index
    %5 = vector.load %arg4[%c0_5, %c0_6] : memref<1x512xf32, #tpu.memory_space<vmem>>, vector<1x512xf32>
    %6 = vector.broadcast %5 : vector<1x512xf32> to vector<8x512xf32>
    %7 = arith.addf %4, %6 : vector<8x512xf32>
    %cst_7 = arith.constant 0.000000e+00 : f32
    %8 = vector.broadcast %cst_7 : f32 to vector<8x512xf32>
    %9 = arith.maximumf %7, %8 : vector<8x512xf32>
    %10 = arith.truncf %9 : vector<8x512xf32> to vector<8x512xbf16>
    %c0_8 = arith.constant 0 : index
    %c0_9 = arith.constant 0 : index
    %11 = vector.load %arg5[%c0_8, %c0_9] : memref<512x512xbf16, #tpu.memory_space<vmem>>, vector<512x512xbf16>
    %cst_10 = arith.constant dense<0.000000e+00> : vector<8x512xf32>
    %12 = tpu.matmul %10, %11, %cst_10 {dimension_numbers = #tpu.dot_dimension_numbers<[1], [0], [0], [1], [0, 0, 1, 1], [], []>} : vector<8x512xbf16>, vector<512x512xbf16>, vector<8x512xf32> -> vector<8x512xf32>
    %c0_11 = arith.constant 0 : index
    %c0_12 = arith.constant 0 : index
    %13 = vector.load %arg6[%c0_11, %c0_12] : memref<1x512xf32, #tpu.memory_space<vmem>>, vector<1x512xf32>
    %14 = vector.broadcast %13 : vector<1x512xf32> to vector<8x512xf32>
    %15 = arith.addf %12, %14 : vector<8x512xf32>
    %cst_13 = arith.constant 0.000000e+00 : f32
    %16 = vector.broadcast %cst_13 : f32 to vector<8x512xf32>
    %17 = arith.maximumf %15, %16 : vector<8x512xf32>
    %18 = arith.truncf %17 : vector<8x512xf32> to vector<8x512xbf16>
    %c0_14 = arith.constant 0 : index
    %c0_15 = arith.constant 0 : index
    %19 = vector.load %arg7[%c0_14, %c0_15] : memref<512x384xbf16, #tpu.memory_space<vmem>>, vector<512x384xbf16>
    %cst_16 = arith.constant dense<0.000000e+00> : vector<8x384xf32>
    %20 = tpu.matmul %18, %19, %cst_16 {dimension_numbers = #tpu.dot_dimension_numbers<[1], [0], [0], [1], [0, 0, 1, 1], [], []>} : vector<8x512xbf16>, vector<512x384xbf16>, vector<8x384xf32> -> vector<8x384xf32>
    %c0_17 = arith.constant 0 : index
    %c0_18 = arith.constant 0 : index
    %21 = vector.load %arg8[%c0_17, %c0_18] : memref<1x384xf32, #tpu.memory_space<vmem>>, vector<1x384xf32>
    %22 = vector.broadcast %21 : vector<1x384xf32> to vector<8x384xf32>
    %23 = arith.addf %20, %22 : vector<8x384xf32>
    %cst_19 = arith.constant 0.000000e+00 : f32
    %24 = vector.broadcast %cst_19 : f32 to vector<8x384xf32>
    %25 = arith.maximumf %23, %24 : vector<8x384xf32>
    %26 = arith.truncf %25 : vector<8x384xf32> to vector<8x384xbf16>
    %c0_20 = arith.constant 0 : index
    %c0_21 = arith.constant 0 : index
    %27 = vector.load %arg9[%c0_20, %c0_21] : memref<384x128xbf16, #tpu.memory_space<vmem>>, vector<384x128xbf16>
    %cst_22 = arith.constant dense<0.000000e+00> : vector<8x128xf32>
    %28 = tpu.matmul %26, %27, %cst_22 {dimension_numbers = #tpu.dot_dimension_numbers<[1], [0], [0], [1], [0, 0, 1, 1], [], []>} : vector<8x384xbf16>, vector<384x128xbf16>, vector<8x128xf32> -> vector<8x128xf32>
    %c0_23 = arith.constant 0 : index
    %c0_24 = arith.constant 0 : index
    %29 = vector.load %arg10[%c0_23, %c0_24] : memref<1x128xf32, #tpu.memory_space<vmem>>, vector<1x128xf32>
    %30 = vector.broadcast %29 : vector<1x128xf32> to vector<8x128xf32>
    %31 = arith.addf %28, %30 : vector<8x128xf32>
    %32 = math.tanh %31 : vector<8x128xf32>
    %33 = vector.broadcast %0 : f32 to vector<8x128xf32>
    %34 = arith.mulf %33, %32 : vector<8x128xf32>
    %c0_25 = arith.constant 0 : index
    %c0_26 = arith.constant 0 : index
    %35 = vector.load %arg11[%c0_25, %c0_26] : memref<8x128xf32, #tpu.memory_space<vmem>>, vector<8x128xf32>
    tpu.vector_store %arg11[%c0_25, %c0_26], %34 {strides = array<i32>} : memref<8x128xf32, #tpu.memory_space<vmem>>, vector<8x128xf32>,
    return
  }
  func.func @transform_0(%arg0: i32) -> (i32, i32) {
    %c0_i32 = arith.constant 0 : i32
    %c0_i32_0 = arith.constant 0 : i32
    %c0_i32_1 = arith.constant 0 : i32
    return %c0_i32, %c0_i32_0 : i32, i32
  }
  func.func @transform_1(%arg0: i32) -> (i32, i32) {
    %c0_i32 = arith.constant 0 : i32
    %c0_i32_0 = arith.constant 0 : i32
    return %arg0, %c0_i32 : i32, i32
  }
  func.func @transform_2(%arg0: i32) -> (i32, i32) {
    %c0_i32 = arith.constant 0 : i32
    %c0_i32_0 = arith.constant 0 : i32
    %c0_i32_1 = arith.constant 0 : i32
    return %c0_i32, %c0_i32_0 : i32, i32
  }
  func.func @transform_3(%arg0: i32) -> (i32, i32) {
    %c0_i32 = arith.constant 0 : i32
    %c0_i32_0 = arith.constant 0 : i32
    %c0_i32_1 = arith.constant 0 : i32
    return %c0_i32, %c0_i32_0 : i32, i32
  }
  func.func @transform_4(%arg0: i32) -> (i32, i32) {
    %c0_i32 = arith.constant 0 : i32
    %c0_i32_0 = arith.constant 0 : i32
    %c0_i32_1 = arith.constant 0 : i32
    return %c0_i32, %c0_i32_0 : i32, i32
  }
  func.func @transform_5(%arg0: i32) -> (i32, i32) {
    %c0_i32 = arith.constant 0 : i32
    %c0_i32_0 = arith.constant 0 : i32
    %c0_i32_1 = arith.constant 0 : i32
    return %c0_i32, %c0_i32_0 : i32, i32
  }
  func.func @transform_6(%arg0: i32) -> (i32, i32) {
    %c0_i32 = arith.constant 0 : i32
    %c0_i32_0 = arith.constant 0 : i32
    %c0_i32_1 = arith.constant 0 : i32
    return %c0_i32, %c0_i32_0 : i32, i32
  }
  func.func @transform_7(%arg0: i32) -> (i32, i32) {
    %c0_i32 = arith.constant 0 : i32
    %c0_i32_0 = arith.constant 0 : i32
    %c0_i32_1 = arith.constant 0 : i32
    return %c0_i32, %c0_i32_0 : i32, i32
  }
  func.func @transform_8(%arg0: i32) -> (i32, i32) {
    %c0_i32 = arith.constant 0 : i32
    %c0_i32_0 = arith.constant 0 : i32
    %c0_i32_1 = arith.constant 0 : i32
    return %c0_i32, %c0_i32_0 : i32, i32
  }
  func.func @transform_9(%arg0: i32) -> (i32, i32) {
    %c0_i32 = arith.constant 0 : i32
    %c0_i32_0 = arith.constant 0 : i32
    %c0_i32_1 = arith.constant 0 : i32
    return %c0_i32, %c0_i32_0 : i32, i32
  }
  func.func @transform_10(%arg0: i32) -> (i32, i32) {
    %c0_i32 = arith.constant 0 : i32
    %c0_i32_0 = arith.constant 0 : i32
    return %arg0, %c0_i32 : i32, i32
  }
}

</mosaic_0001>

<llo_original>
// kernel: actor_net_apply.1
$region0: #{actor_net_apply.1}
  #allocation0 [shape = 'u32[]', space=smem, size = 0x4, offset = 0x4, fixed_abs, tag = 'smem constant byte address 0x4 - core index']
  #allocation1 [shape = 'u32[144,128]{1,0:T(1,128)}', space=vmem, size = 0x12000, scoped, tag = 'internal scratch']
  #allocation2 [shape = 'f32[1,1]{1,0:T(1,128)S(6)}', space=smem, size = 0x200, scoped, tag = 'scoped memory for actor_net_apply.1']
  %s0 = inlined_call_operand.<no memory space> [shape: f32[1,1], index: 0, kind: input, shape index: {}]
  %s1 = inlined_call_operand.vmem [shape: f32[8,16], index: 1, kind: input, shape index: {}]
  %s2 = inlined_call_operand.vmem [shape: bf16[16,512], index: 2, kind: input, shape index: {}]
  %s3 = inlined_call_operand.vmem [shape: f32[1,512], index: 3, kind: input, shape index: {}]
  %s4 = inlined_call_operand.hbm [shape: bf16[512,512], index: 4, kind: input, shape index: {}]
  %s5 = inlined_call_operand.hbm [shape: f32[1,512], index: 5, kind: input, shape index: {}]
  %s6 = inlined_call_operand.hbm [shape: bf16[512,384], index: 6, kind: input, shape index: {}]
  %s7 = inlined_call_operand.vmem [shape: f32[1,384], index: 7, kind: input, shape index: {}]
  %s8 = inlined_call_operand.hbm [shape: bf16[384,128], index: 8, kind: input, shape index: {}]
  %s9 = inlined_call_operand.hbm [shape: f32[1,128], index: 9, kind: input, shape index: {}]
  %s10 = inlined_call_operand.vmem [shape: f32[8,128], index: 10, kind: output, shape index: {}]
  %s11 = sld [smem:[#allocation0]]
  $region70: #{actor_net_apply.1} parent=0
    _
  %s13 = ssub.s32 1, %s11
  %s14 = scalar_select 0, %s13, %s11
  %15 = sst [smem:[#allocation2]] %s0
  $region1: #{actor_net_apply.1} parent=0
    #allocation3 [shape = 'u8[524288]{0}', space=vmem, size = 0x80000, scoped, tag = 'input window, operand 4, single buffered']
    #allocation4 [shape = 's32[1]{0}', space=sflag, size = 0x4, scoped, tag = 'scoped memory for actor_net_apply.1']
    #allocation5 [shape = 'u8[2048]{0}', space=vmem, size = 0x800, scoped, tag = 'input window, operand 5, single buffered']
    #allocation6 [shape = 's32[1]{0}', space=sflag, size = 0x4, scoped, tag = 'scoped memory for actor_net_apply.1']
    #allocation7 [shape = 'u8[393216]{0}', space=vmem, size = 0x60000, scoped, tag = 'input window, operand 6, single buffered']
    #allocation8 [shape = 'u8[98304]{0}', space=vmem, size = 0x18000, scoped, tag = 'input window, operand 8, single buffered']
    #allocation9 [shape = 's32[1]{0}', space=sflag, size = 0x4, scoped, tag = 'scoped memory for actor_net_apply.1']
    #allocation10 [shape = 'u8[512]{0}', space=vmem, size = 0x400, scoped, tag = 'input window, operand 9, single buffered']
    %16 = vsyncpa [#allocation4], 0
    %17 = vsyncpa [#allocation6], 0
    %18 = vsyncpa [#allocation9], 0
    // Predicated region
    $region2: #{actor_net_apply.1} parent=1 // pred_check
      _
    $region3: #{actor_net_apply.1} parent=1 // pred_check_branch
      %20 = sbr.rel (0) target = $region5
    $region4: #{actor_net_apply.1} parent=1 // pred_region
      _
    $region5: #{actor_net_apply.1} parent=1 // pred_fallthru
      _
    // Predicated region
    $region6: #{actor_net_apply.1} parent=1 // pred_check
      _
    $region7: #{actor_net_apply.1} parent=1 // pred_check_branch
      %22 = sbr.rel (0) target = $region9
    $region8: #{actor_net_apply.1} parent=1 // pred_region
      _
    $region9: #{actor_net_apply.1} parent=1 // pred_fallthru
      _
    // Predicated region
    $region10: #{actor_net_apply.1} parent=1 // pred_check
      _
    $region11: #{actor_net_apply.1} parent=1 // pred_check_branch
      %24 = sbr.rel (0) target = $region13
    $region12: #{actor_net_apply.1} parent=1 // pred_region
      _
    $region13: #{actor_net_apply.1} parent=1 // pred_fallthru
      _
    // Predicated region
    $region14: #{actor_net_apply.1} parent=1 // pred_check
      _
    $region15: #{actor_net_apply.1} parent=1 // pred_check_branch
      %26 = sbr.rel (0) target = $region17
    $region16: #{actor_net_apply.1} parent=1 // pred_region
      _
    $region17: #{actor_net_apply.1} parent=1 // pred_fallthru
      _
    // Predicated region
    $region18: #{actor_net_apply.1} parent=1 // pred_check
      _
    $region19: #{actor_net_apply.1} parent=1 // pred_check_branch
      %28 = sbr.rel (0) target = $region21
    $region20: #{actor_net_apply.1} parent=1 // pred_region
      %s30 = ssub.s32 16384, 16384
      %31 = vsyncadd [#allocation4], %s30
      %s32 = sshll.u32 [#allocation3], 4
      %s33 = int_to_ptr.vmem [resolvable:$true] %s32
      %38 = dma.hbm_to_vmem [thread:$0]  %s4, 16384, %s33, [#allocation4], 256, 256, 16
    $region21: #{actor_net_apply.1} parent=1 // pred_fallthru
      _
    // Predicated region
    $region22: #{actor_net_apply.1} parent=1 // pred_check
      _
    $region23: #{actor_net_apply.1} parent=1 // pred_check_branch
      %40 = sbr.rel (0) target = $region25
    $region24: #{actor_net_apply.1} parent=1 // pred_region
      %s42 = ssub.s32 64, 64
      %43 = vsyncadd [#allocation6], %s42
      %s45 = sshll.u32 [#allocation5], 4
      %s46 = int_to_ptr.vmem [resolvable:$true] %s45
      %48 = dma.hbm_to_vmem [thread:$0]  %s5, 64, %s46, [#allocation6]
    $region25: #{actor_net_apply.1} parent=1 // pred_fallthru
      _
    // Predicated region
    $region26: #{actor_net_apply.1} parent=1 // pred_check
      _
    $region27: #{actor_net_apply.1} parent=1 // pred_check_branch
      %50 = sbr.rel (0) target = $region29
    $region28: #{actor_net_apply.1} parent=1 // pred_region
      %s52 = ssub.s32 12288, 12288
      %53 = vsyncadd [#allocation6], %s52
      %s54 = sshll.u32 [#allocation7], 4
      %s55 = int_to_ptr.vmem [resolvable:$true] %s54
      %60 = dma.hbm_to_vmem [thread:$0]  %s6, 12288, %s55, [#allocation6], 192, 192, 12
    $region29: #{actor_net_apply.1} parent=1 // pred_fallthru
      _
    // Predicated region
    $region30: #{actor_net_apply.1} parent=1 // pred_check
      _
    $region31: #{actor_net_apply.1} parent=1 // pred_check_branch
      %62 = sbr.rel (0) target = $region33
    $region32: #{actor_net_apply.1} parent=1 // pred_region
      _
    $region33: #{actor_net_apply.1} parent=1 // pred_fallthru
      _
    // Predicated region
    $region34: #{actor_net_apply.1} parent=1 // pred_check
      _
    $region35: #{actor_net_apply.1} parent=1 // pred_check_branch
      %64 = sbr.rel (0) target = $region37
    $region36: #{actor_net_apply.1} parent=1 // pred_region
      %s66 = ssub.s32 3072, 3072
      %67 = vsyncadd [#allocation9], %s66
      %s68 = sshll.u32 [#allocation8], 4
      %s69 = int_to_ptr.vmem [resolvable:$true] %s68
      %74 = dma.hbm_to_vmem [thread:$0]  %s8, 3072, %s69, [#allocation9], 64, 64, 4
    $region37: #{actor_net_apply.1} parent=1 // pred_fallthru
      _
    // Predicated region
    $region38: #{actor_net_apply.1} parent=1 // pred_check
      _
    $region39: #{actor_net_apply.1} parent=1 // pred_check_branch
      %76 = sbr.rel (0) target = $region41
    $region40: #{actor_net_apply.1} parent=1 // pred_region
      %s78 = ssub.s32 16, 16
      %79 = vsyncadd [#allocation9], %s78
      %s81 = sshll.u32 [#allocation10], 4
      %s82 = int_to_ptr.vmem [resolvable:$true] %s81
      %84 = dma.hbm_to_vmem [thread:$0]  %s9, 16, %s82, [#allocation9]
    $region41: #{actor_net_apply.1} parent=1 // pred_fallthru
      _
    // Predicated region
    $region42: #{actor_net_apply.1} parent=1 // pred_check
      _
    $region43: #{actor_net_apply.1} parent=1 // pred_check_branch
      %86 = sbr.rel (0) target = $region45
    $region44: #{actor_net_apply.1} parent=1 // pred_region
      %87 = dma.done [#allocation4], 16384
    $region45: #{actor_net_apply.1} parent=1 // pred_fallthru
      _
    // Predicated region
    $region46: #{actor_net_apply.1} parent=1 // pred_check
      _
    $region47: #{actor_net_apply.1} parent=1 // pred_check_branch
      %89 = sbr.rel (0) target = $region49
    $region48: #{actor_net_apply.1} parent=1 // pred_region
      %90 = dma.done [#allocation6], 64
    $region49: #{actor_net_apply.1} parent=1 // pred_fallthru
      _
    // Predicated region
    $region50: #{actor_net_apply.1} parent=1 // pred_check
      _
    $region51: #{actor_net_apply.1} parent=1 // pred_check_branch
      %92 = sbr.rel (0) target = $region53
    $region52: #{actor_net_apply.1} parent=1 // pred_region
      %93 = dma.done [#allocation6], 12288
    $region53: #{actor_net_apply.1} parent=1 // pred_fallthru
      _
    // Predicated region
    $region54: #{actor_net_apply.1} parent=1 // pred_check
      _
    $region55: #{actor_net_apply.1} parent=1 // pred_check_branch
      %95 = sbr.rel (0) target = $region57
    $region56: #{actor_net_apply.1} parent=1 // pred_region
      %96 = dma.done [#allocation9], 3072
    $region57: #{actor_net_apply.1} parent=1 // pred_fallthru
      _
    // Predicated region
    $region58: #{actor_net_apply.1} parent=1 // pred_check
      _
    $region59: #{actor_net_apply.1} parent=1 // pred_check_branch
      %98 = sbr.rel (0) target = $region61
    $region60: #{actor_net_apply.1} parent=1 // pred_region
      %99 = dma.done [#allocation9], 16
    $region61: #{actor_net_apply.1} parent=1 // pred_fallthru
      _
    %s101 = sld [smem:[#allocation2]]
    %v102 = vld [vmem:[%s1] sm:$0xff]
    %v103 = vpack.c.bf16 %v102, %v102
    %v104 = vld [vmem:[%s2] sm:$0xff]
    %v105 = vld [vmem:[%s2 + $0x8] sm:$0xff]
    %v106 = vld [vmem:[%s2 + $0x10] sm:$0xff]
    %v107 = vld [vmem:[%s2 + $0x18] sm:$0xff]
    %v108 = vld [vmem:[%s3] sm:$0xf]
    %v110 = vlaneseq
    %v111 = vshrl.u32 %v110, 7
    %v112 = vsub.s32 0, %v111
    %v113 = vrot.slane %v108, %v112
    %v114 = vlaneseq
    %v115 = vshrl.u32 %v114, 7
    %v116 = vsub.s32 1, %v115
    %v117 = vrot.slane %v108, %v116
    %v118 = vlaneseq
    %v119 = vshrl.u32 %v118, 7
    %v120 = vsub.s32 2, %v119
    %v121 = vrot.slane %v108, %v120
    %v122 = vlaneseq
    %v123 = vshrl.u32 %v122, 7
    %v124 = vsub.s32 3, %v123
    %v125 = vrot.slane %v108, %v124
    %v134 = vunpack.c.l.b16 %v104
    %v135 = vunpack.c.h.b16 %v104
    %v136 = vunpack.c.l.b16 %v105
    %v137 = vunpack.c.h.b16 %v105
    %v138 = vunpack.c.l.b16 %v106
    %v139 = vunpack.c.h.b16 %v106
    %v140 = vunpack.c.l.b16 %v107
    %v141 = vunpack.c.h.b16 %v107
    %v142 = vpack.c.b16 %v138, %v134
    %v143 = vpack.c.b16 %v139, %v135
    %v144 = vpack.c.b16 %v140, %v136
    %v145 = vpack.c.b16 %v141, %v137
    %vm150 = vcmask 130048
    %v152 = vsel %vm150, %v103, 0
    %154 = vmatprep.subr.bf16.mxu0 %v143
    %155 = vmatpush1.bf16.msra.mxu0 %v142
    %156 = vmatprep.subr.bf16.mxu0 0
    %157 = vmatpush1.bf16.msra.mxu0 0
    %158 = vmatprep.subr.bf16.mxu0 0
    %159 = vmatpush1.bf16.msra.mxu0 0
    %160 = vmatprep.subr.bf16.mxu0 0
    %161 = vmatpush1.bf16.msra.mxu0 0
    %162 = vmatprep.subr.bf16.mxu0 0
    %163 = vmatpush1.bf16.msra.mxu0 0
    %164 = vmatprep.subr.bf16.mxu0 0
    %165 = vmatpush1.bf16.msra.mxu0 0
    %166 = vmatprep.subr.bf16.mxu0 0
    %167 = vmatpush1.bf16.msra.mxu0 0
    %168 = vmatprep.subr.bf16.mxu0 0
    %169 = vmatpush1.bf16.msra.mxu0 0
    %170 = vmatprep.subr.bf16.mxu0 0
    %171 = vmatpush1.bf16.msra.mxu0 0
    %172 = vmatprep.subr.bf16.mxu0 0
    %173 = vmatpush1.bf16.msra.mxu0 0
    %174 = vmatprep.subr.bf16.mxu0 0
    %175 = vmatpush1.bf16.msra.mxu0 0
    %176 = vmatprep.subr.bf16.mxu0 0
    %177 = vmatpush1.bf16.msra.mxu0 0
    %178 = vmatprep.subr.bf16.mxu0 0
    %179 = vmatpush1.bf16.msra.mxu0 0
    %180 = vmatprep.subr.bf16.mxu0 0
    %181 = vmatpush1.bf16.msra.mxu0 0
    %182 = vmatprep.subr.bf16.mxu0 0
    %183 = vmatpush1.bf16.msra.mxu0 0
    %184 = vmatprep.subr.bf16.mxu0 0
    %185 = vmatpush1.bf16.msra.mxu0 0
    %186 = vmatprep.mubr.bf16.mxu0 0
    %187 = vmatmul.mubr.bf16.gmra.mrb[0].mxu0 %v152
    %v188 = vpop.f32.mrb[0].mxu0
    %v189 = vadd.f32 %v113, %v188
    %v190 = vpop.f32.mrb[0].mxu0
    %v191 = vadd.f32 %v117, %v190
    %v192 = vpop.f32.mrb[0].mxu0
    %v193 = vpop.f32.mrb[0].mxu0
    %194 = vdwg.mxu0
    %195 = vmatprep.subr.bf16.mxu0 %v145
    %196 = vmatpush1.bf16.msra.mxu0 %v144
    %197 = vmatprep.subr.bf16.mxu0 0
    %198 = vmatpush1.bf16.msra.mxu0 0
    %199 = vmatprep.subr.bf16.mxu0 0
    %200 = vmatpush1.bf16.msra.mxu0 0
    %201 = vmatprep.subr.bf16.mxu0 0
    %202 = vmatpush1.bf16.msra.mxu0 0
    %203 = vmatprep.subr.bf16.mxu0 0
    %204 = vmatpush1.bf16.msra.mxu0 0
    %205 = vmatprep.subr.bf16.mxu0 0
    %206 = vmatpush1.bf16.msra.mxu0 0
    %207 = vmatprep.subr.bf16.mxu0 0
    %208 = vmatpush1.bf16.msra.mxu0 0
    %209 = vmatprep.subr.bf16.mxu0 0
    %210 = vmatpush1.bf16.msra.mxu0 0
    %211 = vmatprep.subr.bf16.mxu0 0
    %212 = vmatpush1.bf16.msra.mxu0 0
    %213 = vmatprep.subr.bf16.mxu0 0
    %214 = vmatpush1.bf16.msra.mxu0 0
    %215 = vmatprep.subr.bf16.mxu0 0
    %216 = vmatpush1.bf16.msra.mxu0 0
    %217 = vmatprep.subr.bf16.mxu0 0
    %218 = vmatpush1.bf16.msra.mxu0 0
    %219 = vmatprep.subr.bf16.mxu0 0
    %220 = vmatpush1.bf16.msra.mxu0 0
    %221 = vmatprep.subr.bf16.mxu0 0
    %222 = vmatpush1.bf16.msra.mxu0 0
    %223 = vmatprep.subr.bf16.mxu0 0
    %224 = vmatpush1.bf16.msra.mxu0 0
    %225 = vmatprep.subr.bf16.mxu0 0
    %226 = vmatpush1.bf16.msra.mxu0 0
    %227 = vmatprep.mubr.bf16.mxu0 0
    %228 = vmatmul.mubr.bf16.gmra.mrb[0].mxu0 %v152
    %v229 = vpop.f32.mrb[0].mxu0
    %v230 = vadd.f32 %v121, %v229
    %v231 = vpop.f32.mrb[0].mxu0
    %v232 = vadd.f32 %v125, %v231
    %v233 = vpop.f32.mrb[0].mxu0
    %v234 = vpop.f32.mrb[0].mxu0
    %235 = vdwg.mxu0
    %v236 = vmax.f32 %v189, 0.0
    %v237 = vmax.f32 %v191, 0.0
    %v238 = vmax.f32 %v230, 0.0
    %v239 = vmax.f32 %v232, 0.0
    %v240 = vpack.c.bf16 %v236, %v236
    %v241 = vpack.c.bf16 %v237, %v237
    %v242 = vpack.c.bf16 %v238, %v238
    %v243 = vpack.c.bf16 %v239, %v239
    %v244 = vld [vmem:[#allocation3] sm:$0xff]
    %v245 = vld [vmem:[#allocation3 + $0x8] sm:$0xff]
    %v246 = vld [vmem:[#allocation3 + $0x10] sm:$0xff]
    %v247 = vld [vmem:[#allocation3 + $0x18] sm:$0xff]
    %v248 = vld [vmem:[#allocation3 + $0x20] sm:$0xff]
    %v249 = vld [vmem:[#allocation3 + $0x28] sm:$0xff]
    %v250 = vld [vmem:[#allocation3 + $0x30] sm:$0xff]
    %v251 = vld [vmem:[#allocation3 + $0x38] sm:$0xff]
    %v252 = vld [vmem:[#allocation3 + $0x40] sm:$0xff]
    %v253 = vld [vmem:[#allocation3 + $0x48] sm:$0xff]
    %v254 = vld [vmem:[#allocation3 + $0x50] sm:$0xff]
    %v255 = vld [vmem:[#allocation3 + $0x58] sm:$0xff]
    %v256 = vld [vmem:[#allocation3 + $0x60] sm:$0xff]
    %v257 = vld [vmem:[#allocation3 + $0x68] sm:$0xff]
    %v258 = vld [vmem:[#allocation3 + $0x70] sm:$0xff]
    %v259 = vld [vmem:[#allocation3 + $0x78] sm:$0xff]
    %v260 = vld [vmem:[#allocation3 + $0x80] sm:$0xff]
    %v261 = vld [vmem:[#allocation3 + $0x88] sm:$0xff]
    %v262 = vld [vmem:[#allocation3 + $0x90] sm:$0xff]
    %v263 = vld [vmem:[#allocation3 + $0x98] sm:$0xff]
    %v264 = vld [vmem:[#allocation3 + $0xa0] sm:$0xff]
    %v265 = vld [vmem:[#allocation3 + $0xa8] sm:$0xff]
    %v266 = vld [vmem:[#allocation3 + $0xb0] sm:$0xff]
    %v267 = vld [vmem:[#allocation3 + $0xb8] sm:$0xff]
    %v268 = vld [vmem:[#allocation3 + $0xc0] sm:$0xff]
    %v269 = vld [vmem:[#allocation3 + $0xc8] sm:$0xff]
    %v270 = vld [vmem:[#allocation3 + $0xd0] sm:$0xff]
    %v271 = vld [vmem:[#allocation3 + $0xd8] sm:$0xff]
    %v272 = vld [vmem:[#allocation3 + $0xe0] sm:$0xff]
    %v273 = vld [vmem:[#allocation3 + $0xe8] sm:$0xff]
    %v274 = vld [vmem:[#allocation3 + $0xf0] sm:$0xff]
    %v275 = vld [vmem:[#allocation3 + $0xf8] sm:$0xff]
    %v276 = vld [vmem:[#allocation3 + $0x100] sm:$0xff]
    %v277 = vld [vmem:[#allocation3 + $0x108] sm:$0xff]
    %v278 = vld [vmem:[#allocation3 + $0x110] sm:$0xff]
    %v279 = vld [vmem:[#allocation3 + $0x118] sm:$0xff]
    %v280 = vld [vmem:[#allocation3 + $0x120] sm:$0xff]
    %v281 = vld [vmem:[#allocation3 + $0x128] sm:$0xff]
    %v282 = vld [vmem:[#allocation3 + $0x130] sm:$0xff]
    %v283 = vld [vmem:[#allocation3 + $0x138] sm:$0xff]
    %v284 = vld [vmem:[#allocation3 + $0x140] sm:$0xff]
    %v285 = vld [vmem:[#allocation3 + $0x148] sm:$0xff]
    %v286 = vld [vmem:[#allocation3 + $0x150] sm:$0xff]
    %v287 = vld [vmem:[#allocation3 + $0x158] sm:$0xff]
    %v288 = vld [vmem:[#allocation3 + $0x160] sm:$0xff]
    %v289 = vld [vmem:[#allocation3 + $0x168] sm:$0xff]
    %v290 = vld [vmem:[#allocation3 + $0x170] sm:$0xff]
    %v291 = vld [vmem:[#allocation3 + $0x178] sm:$0xff]
    %v292 = vld [vmem:[#allocation3 + $0x180] sm:$0xff]
    %v293 = vld [vmem:[#allocation3 + $0x188] sm:$0xff]
    %v294 = vld [vmem:[#allocation3 + $0x190] sm:$0xff]
    %v295 = vld [vmem:[#allocation3 + $0x198] sm:$0xff]
    %v296 = vld [vmem:[#allocation3 + $0x1a0] sm:$0xff]
    %v297 = vld [vmem:[#allocation3 + $0x1a8] sm:$0xff]
    %v298 = vld [vmem:[#allocation3 + $0x1b0] sm:$0xff]
    %v299 = vld [vmem:[#allocation3 + $0x1b8] sm:$0xff]
    %v300 = vld [vmem:[#allocation3 + $0x1c0] sm:$0xff]
    %v301 = vld [vmem:[#allocation3 + $0x1c8] sm:$0xff]
    %v302 = vld [vmem:[#allocation3 + $0x1d0] sm:$0xff]
    %v303 = vld [vmem:[#allocation3 + $0x1d8] sm:$0xff]
    %v304 = vld [vmem:[#allocation3 + $0x1e0] sm:$0xff]
    %v305 = vld [vmem:[#allocation3 + $0x1e8] sm:$0xff]
    %v306 = vld [vmem:[#allocation3 + $0x1f0] sm:$0xff]
    %v307 = vld [vmem:[#allocation3 + $0x1f8] sm:$0xff]
    %v308 = vld [vmem:[#allocation3 + $0x200] sm:$0xff]
    %v309 = vld [vmem:[#allocation3 + $0x208] sm:$0xff]
    %v310 = vld [vmem:[#allocation3 + $0x210] sm:$0xff]
    %v311 = vld [vmem:[#allocation3 + $0x218] sm:$0xff]
    %v312 = vld [vmem:[#allocation3 + $0x220] sm:$0xff]
    %v313 = vld [vmem:[#allocation3 + $0x228] sm:$0xff]
    %v314 = vld [vmem:[#allocation3 + $0x230] sm:$0xff]
    %v315 = vld [vmem:[#allocation3 + $0x238] sm:$0xff]
    %v316 = vld [vmem:[#allocation3 + $0x240] sm:$0xff]
    %v317 = vld [vmem:[#allocation3 + $0x248] sm:$0xff]
    %v318 = vld [vmem:[#allocation3 + $0x250] sm:$0xff]
    %v319 = vld [vmem:[#allocation3 + $0x258] sm:$0xff]
    %v320 = vld [vmem:[#allocation3 + $0x260] sm:$0xff]
    %v321 = vld [vmem:[#allocation3 + $0x268] sm:$0xff]
    %v322 = vld [vmem:[#allocation3 + $0x270] sm:$0xff]
    %v323 = vld [vmem:[#allocation3 + $0x278] sm:$0xff]
    %v324 = vld [vmem:[#allocation3 + $0x280] sm:$0xff]
    %v325 = vld [vmem:[#allocation3 + $0x288] sm:$0xff]
    %v326 = vld [vmem:[#allocation3 + $0x290] sm:$0xff]
    %v327 = vld [vmem:[#allocation3 + $0x298] sm:$0xff]
    %v328 = vld [vmem:[#allocation3 + $0x2a0] sm:$0xff]
    %v329 = vld [vmem:[#allocation3 + $0x2a8] sm:$0xff]
    %v330 = vld [vmem:[#allocation3 + $0x2b0] sm:$0xff]
    %v331 = vld [vmem:[#allocation3 + $0x2b8] sm:$0xff]
    %v332 = vld [vmem:[#allocation3 + $0x2c0] sm:$0xff]
    %v333 = vld [vmem:[#allocation3 + $0x2c8] sm:$0xff]
    %v334 = vld [vmem:[#allocation3 + $0x2d0] sm:$0xff]
    %v335 = vld [vmem:[#allocation3 + $0x2d8] sm:$0xff]
    %v336 = vld [vmem:[#allocation3 + $0x2e0] sm:$0xff]
    %v337 = vld [vmem:[#allocation3 + $0x2e8] sm:$0xff]
    %v338 = vld [vmem:[#allocation3 + $0x2f0] sm:$0xff]
    %v339 = vld [vmem:[#allocation3 + $0x2f8] sm:$0xff]
    %v340 = vld [vmem:[#allocation3 + $0x300] sm:$0xff]
    %v341 = vld [vmem:[#allocation3 + $0x308] sm:$0xff]
    %v342 = vld [vmem:[#allocation3 + $0x310] sm:$0xff]
    %v343 = vld [vmem:[#allocation3 + $0x318] sm:$0xff]
    %v344 = vld [vmem:[#allocation3 + $0x320] sm:$0xff]
    %v345 = vld [vmem:[#allocation3 + $0x328] sm:$0xff]
    %v346 = vld [vmem:[#allocation3 + $0x330] sm:$0xff]
    %v347 = vld [vmem:[#allocation3 + $0x338] sm:$0xff]
    %v348 = vld [vmem:[#allocation3 + $0x340] sm:$0xff]
    %v349 = vld [vmem:[#allocation3 + $0x348] sm:$0xff]
    %v350 = vld [vmem:[#allocation3 + $0x350] sm:$0xff]
    %v351 = vld [vmem:[#allocation3 + $0x358] sm:$0xff]
    %v352 = vld [vmem:[#allocation3 + $0x360] sm:$0xff]
    %v353 = vld [vmem:[#allocation3 + $0x368] sm:$0xff]
    %v354 = vld [vmem:[#allocation3 + $0x370] sm:$0xff]
    %v355 = vld [vmem:[#allocation3 + $0x378] sm:$0xff]
    %v356 = vld [vmem:[#allocation3 + $0x380] sm:$0xff]
    %v357 = vld [vmem:[#allocation3 + $0x388] sm:$0xff]
    %v358 = vld [vmem:[#allocation3 + $0x390] sm:$0xff]
    %v359 = vld [vmem:[#allocation3 + $0x398] sm:$0xff]
    %v360 = vld [vmem:[#allocation3 + $0x3a0] sm:$0xff]
    %v361 = vld [vmem:[#allocation3 + $0x3a8] sm:$0xff]
    %v362 = vld [vmem:[#allocation3 + $0x3b0] sm:$0xff]
    %v363 = vld [vmem:[#allocation3 + $0x3b8] sm:$0xff]
    %v364 = vld [vmem:[#allocation3 + $0x3c0] sm:$0xff]
    %v365 = vld [vmem:[#allocation3 + $0x3c8] sm:$0xff]
    %v366 = vld [vmem:[#allocation3 + $0x3d0] sm:$0xff]
    %v367 = vld [vmem:[#allocation3 + $0x3d8] sm:$0xff]
    %v368 = vld [vmem:[#allocation3 + $0x3e0] sm:$0xff]
    %v369 = vld [vmem:[#allocation3 + $0x3e8] sm:$0xff]
    %v370 = vld [vmem:[#allocation3 + $0x3f0] sm:$0xff]
    %v371 = vld [vmem:[#allocation3 + $0x3f8] sm:$0xff]
    %v372 = vld [vmem:[#allocation5] sm:$0xf]
    %v374 = vlaneseq
    %v375 = vshrl.u32 %v374, 7
    %v376 = vsub.s32 0, %v375
    %v377 = vrot.slane %v372, %v376
    %v378 = vlaneseq
    %v379 = vshrl.u32 %v378, 7
    %v380 = vsub.s32 1, %v379
    %v381 = vrot.slane %v372, %v380
    %v382 = vlaneseq
    %v383 = vshrl.u32 %v382, 7
    %v384 = vsub.s32 2, %v383
    %v385 = vrot.slane %v372, %v384
    %v386 = vlaneseq
    %v387 = vshrl.u32 %v386, 7
    %v388 = vsub.s32 3, %v387
    %v389 = vrot.slane %v372, %v388
    %v522 = vunpack.c.l.b16 %v244
    %v523 = vunpack.c.h.b16 %v244
    %v524 = vunpack.c.l.b16 %v245
    %v525 = vunpack.c.h.b16 %v245
    %v526 = vunpack.c.l.b16 %v246
    %v527 = vunpack.c.h.b16 %v246
    %v528 = vunpack.c.l.b16 %v247
    %v529 = vunpack.c.h.b16 %v247
    %v530 = vunpack.c.l.b16 %v248
    %v531 = vunpack.c.h.b16 %v248
    %v532 = vunpack.c.l.b16 %v249
    %v533 = vunpack.c.h.b16 %v249
    %v534 = vunpack.c.l.b16 %v250
    %v535 = vunpack.c.h.b16 %v250
    %v536 = vunpack.c.l.b16 %v251
    %v537 = vunpack.c.h.b16 %v251
    %v538 = vunpack.c.l.b16 %v252
    %v539 = vunpack.c.h.b16 %v252
    %v540 = vunpack.c.l.b16 %v253
    %v541 = vunpack.c.h.b16 %v253
    %v542 = vunpack.c.l.b16 %v254
    %v543 = vunpack.c.h.b16 %v254
    %v544 = vunpack.c.l.b16 %v255
    %v545 = vunpack.c.h.b16 %v255
    %v546 = vunpack.c.l.b16 %v256
    %v547 = vunpack.c.h.b16 %v256
    %v548 = vunpack.c.l.b16 %v257
    %v549 = vunpack.c.h.b16 %v257
    %v550 = vunpack.c.l.b16 %v258
    %v551 = vunpack.c.h.b16 %v258
    %v552 = vunpack.c.l.b16 %v259
    %v553 = vunpack.c.h.b16 %v259
    %v554 = vunpack.c.l.b16 %v260
    %v555 = vunpack.c.h.b16 %v260
    %v556 = vunpack.c.l.b16 %v261
    %v557 = vunpack.c.h.b16 %v261
    %v558 = vunpack.c.l.b16 %v262
    %v559 = vunpack.c.h.b16 %v262
    %v560 = vunpack.c.l.b16 %v263
    %v561 = vunpack.c.h.b16 %v263
    %v562 = vunpack.c.l.b16 %v264
    %v563 = vunpack.c.h.b16 %v264
    %v564 = vunpack.c.l.b16 %v265
    %v565 = vunpack.c.h.b16 %v265
    %v566 = vunpack.c.l.b16 %v266
    %v567 = vunpack.c.h.b16 %v266
    %v568 = vunpack.c.l.b16 %v267
    %v569 = vunpack.c.h.b16 %v267
    %v570 = vunpack.c.l.b16 %v268
    %v571 = vunpack.c.h.b16 %v268
    %v572 = vunpack.c.l.b16 %v269
    %v573 = vunpack.c.h.b16 %v269
    %v574 = vunpack.c.l.b16 %v270
    %v575 = vunpack.c.h.b16 %v270
    %v576 = vunpack.c.l.b16 %v271
    %v577 = vunpack.c.h.b16 %v271
    %v578 = vunpack.c.l.b16 %v272
    %v579 = vunpack.c.h.b16 %v272
    %v580 = vunpack.c.l.b16 %v273
    %v581 = vunpack.c.h.b16 %v273
    %v582 = vunpack.c.l.b16 %v274
    %v583 = vunpack.c.h.b16 %v274
    %v584 = vunpack.c.l.b16 %v275
    %v585 = vunpack.c.h.b16 %v275
    %v586 = vunpack.c.l.b16 %v276
    %v587 = vunpack.c.h.b16 %v276
    %v588 = vunpack.c.l.b16 %v277
    %v589 = vunpack.c.h.b16 %v277
    %v590 = vunpack.c.l.b16 %v278
    %v591 = vunpack.c.h.b16 %v278
    %v592 = vunpack.c.l.b16 %v279
    %v593 = vunpack.c.h.b16 %v279
    %v594 = vunpack.c.l.b16 %v280
    %v595 = vunpack.c.h.b16 %v280
    %v596 = vunpack.c.l.b16 %v281
    %v597 = vunpack.c.h.b16 %v281
    %v598 = vunpack.c.l.b16 %v282
    %v599 = vunpack.c.h.b16 %v282
    %v600 = vunpack.c.l.b16 %v283
    %v601 = vunpack.c.h.b16 %v283
    %v602 = vunpack.c.l.b16 %v284
    %v603 = vunpack.c.h.b16 %v284
    %v604 = vunpack.c.l.b16 %v285
    %v605 = vunpack.c.h.b16 %v285
    %v606 = vunpack.c.l.b16 %v286
    %v607 = vunpack.c.h.b16 %v286
    %v608 = vunpack.c.l.b16 %v287
    %v609 = vunpack.c.h.b16 %v287
    %v610 = vunpack.c.l.b16 %v288
    %v611 = vunpack.c.h.b16 %v288
    %v612 = vunpack.c.l.b16 %v289
    %v613 = vunpack.c.h.b16 %v289
    %v614 = vunpack.c.l.b16 %v290
    %v615 = vunpack.c.h.b16 %v290
    %v616 = vunpack.c.l.b16 %v291
    %v617 = vunpack.c.h.b16 %v291
    %v618 = vunpack.c.l.b16 %v292
    %v619 = vunpack.c.h.b16 %v292
    %v620 = vunpack.c.l.b16 %v293
    %v621 = vunpack.c.h.b16 %v293
    %v622 = vunpack.c.l.b16 %v294
    %v623 = vunpack.c.h.b16 %v294
    %v624 = vunpack.c.l.b16 %v295
    %v625 = vunpack.c.h.b16 %v295
    %v626 = vunpack.c.l.b16 %v296
    %v627 = vunpack.c.h.b16 %v296
    %v628 = vunpack.c.l.b16 %v297
    %v629 = vunpack.c.h.b16 %v297
    %v630 = vunpack.c.l.b16 %v298
    %v631 = vunpack.c.h.b16 %v298
    %v632 = vunpack.c.l.b16 %v299
    %v633 = vunpack.c.h.b16 %v299
    %v634 = vunpack.c.l.b16 %v300
    %v635 = vunpack.c.h.b16 %v300
    %v636 = vunpack.c.l.b16 %v301
    %v637 = vunpack.c.h.b16 %v301
    %v638 = vunpack.c.l.b16 %v302
    %v639 = vunpack.c.h.b16 %v302
    %v640 = vunpack.c.l.b16 %v303
    %v641 = vunpack.c.h.b16 %v303
    %v642 = vunpack.c.l.b16 %v304
    %v643 = vunpack.c.h.b16 %v304
    %v644 = vunpack.c.l.b16 %v305
    %v645 = vunpack.c.h.b16 %v305
    %v646 = vunpack.c.l.b16 %v306
    %v647 = vunpack.c.h.b16 %v306
    %v648 = vunpack.c.l.b16 %v307
    %v649 = vunpack.c.h.b16 %v307
    %v650 = vunpack.c.l.b16 %v308
    %v651 = vunpack.c.h.b16 %v308
    %v652 = vunpack.c.l.b16 %v309
    %v653 = vunpack.c.h.b16 %v309
    %v654 = vunpack.c.l.b16 %v310
    %v655 = vunpack.c.h.b16 %v310
    %v656 = vunpack.c.l.b16 %v311
    %v657 = vunpack.c.h.b16 %v311
    %v658 = vunpack.c.l.b16 %v312
    %v659 = vunpack.c.h.b16 %v312
    %v660 = vunpack.c.l.b16 %v313
    %v661 = vunpack.c.h.b16 %v313
    %v662 = vunpack.c.l.b16 %v314
    %v663 = vunpack.c.h.b16 %v314
    %v664 = vunpack.c.l.b16 %v315
    %v665 = vunpack.c.h.b16 %v315
    %v666 = vunpack.c.l.b16 %v316
    %v667 = vunpack.c.h.b16 %v316
    %v668 = vunpack.c.l.b16 %v317
    %v669 = vunpack.c.h.b16 %v317
    %v670 = vunpack.c.l.b16 %v318
    %v671 = vunpack.c.h.b16 %v318
    %v672 = vunpack.c.l.b16 %v319
    %v673 = vunpack.c.h.b16 %v319
    %v674 = vunpack.c.l.b16 %v320
    %v675 = vunpack.c.h.b16 %v320
    %v676 = vunpack.c.l.b16 %v321
    %v677 = vunpack.c.h.b16 %v321
    %v678 = vunpack.c.l.b16 %v322
    %v679 = vunpack.c.h.b16 %v322
    %v680 = vunpack.c.l.b16 %v323
    %v681 = vunpack.c.h.b16 %v323
    %v682 = vunpack.c.l.b16 %v324
    %v683 = vunpack.c.h.b16 %v324
    %v684 = vunpack.c.l.b16 %v325
    %v685 = vunpack.c.h.b16 %v325
    %v686 = vunpack.c.l.b16 %v326
    %v687 = vunpack.c.h.b16 %v326
    %v688 = vunpack.c.l.b16 %v327
    %v689 = vunpack.c.h.b16 %v327
    %v690 = vunpack.c.l.b16 %v328
    %v691 = vunpack.c.h.b16 %v328
    %v692 = vunpack.c.l.b16 %v329
    %v693 = vunpack.c.h.b16 %v329
    %v694 = vunpack.c.l.b16 %v330
    %v695 = vunpack.c.h.b16 %v330
    %v696 = vunpack.c.l.b16 %v331
    %v697 = vunpack.c.h.b16 %v331
    %v698 = vunpack.c.l.b16 %v332
    %v699 = vunpack.c.h.b16 %v332
    %v700 = vunpack.c.l.b16 %v333
    %v701 = vunpack.c.h.b16 %v333
    %v702 = vunpack.c.l.b16 %v334
    %v703 = vunpack.c.h.b16 %v334
    %v704 = vunpack.c.l.b16 %v335
    %v705 = vunpack.c.h.b16 %v335
    %v706 = vunpack.c.l.b16 %v336
    %v707 = vunpack.c.h.b16 %v336
    %v708 = vunpack.c.l.b16 %v337
    %v709 = vunpack.c.h.b16 %v337
    %v710 = vunpack.c.l.b16 %v338
    %v711 = vunpack.c.h.b16 %v338
    %v712 = vunpack.c.l.b16 %v339
    %v713 = vunpack.c.h.b16 %v339
    %v714 = vunpack.c.l.b16 %v340
    %v715 = vunpack.c.h.b16 %v340
    %v716 = vunpack.c.l.b16 %v341
    %v717 = vunpack.c.h.b16 %v341
    %v718 = vunpack.c.l.b16 %v342
    %v719 = vunpack.c.h.b16 %v342
    %v720 = vunpack.c.l.b16 %v343
    %v721 = vunpack.c.h.b16 %v343
    %v722 = vunpack.c.l.b16 %v344
    %v723 = vunpack.c.h.b16 %v344
    %v724 = vunpack.c.l.b16 %v345
    %v725 = vunpack.c.h.b16 %v345
    %v726 = vunpack.c.l.b16 %v346
    %v727 = vunpack.c.h.b16 %v346
    %v728 = vunpack.c.l.b16 %v347
    %v729 = vunpack.c.h.b16 %v347
    %v730 = vunpack.c.l.b16 %v348
    %v731 = vunpack.c.h.b16 %v348
    %v732 = vunpack.c.l.b16 %v349
    %v733 = vunpack.c.h.b16 %v349
    %v734 = vunpack.c.l.b16 %v350
    %v735 = vunpack.c.h.b16 %v350
    %v736 = vunpack.c.l.b16 %v351
    %v737 = vunpack.c.h.b16 %v351
    %v738 = vunpack.c.l.b16 %v352
    %v739 = vunpack.c.h.b16 %v352
    %v740 = vunpack.c.l.b16 %v353
    %v741 = vunpack.c.h.b16 %v353
    %v742 = vunpack.c.l.b16 %v354
    %v743 = vunpack.c.h.b16 %v354
    %v744 = vunpack.c.l.b16 %v355
    %v745 = vunpack.c.h.b16 %v355
    %v746 = vunpack.c.l.b16 %v356
    %v747 = vunpack.c.h.b16 %v356
    %v748 = vunpack.c.l.b16 %v357
    %v749 = vunpack.c.h.b16 %v357
    %v750 = vunpack.c.l.b16 %v358
    %v751 = vunpack.c.h.b16 %v358
    %v752 = vunpack.c.l.b16 %v359
    %v753 = vunpack.c.h.b16 %v359
    %v754 = vunpack.c.l.b16 %v360
    %v755 = vunpack.c.h.b16 %v360
    %v756 = vunpack.c.l.b16 %v361
    %v757 = vunpack.c.h.b16 %v361
    %v758 = vunpack.c.l.b16 %v362
    %v759 = vunpack.c.h.b16 %v362
    %v760 = vunpack.c.l.b16 %v363
    %v761 = vunpack.c.h.b16 %v363
    %v762 = vunpack.c.l.b16 %v364
    %v763 = vunpack.c.h.b16 %v364
    %v764 = vunpack.c.l.b16 %v365
    %v765 = vunpack.c.h.b16 %v365
    %v766 = vunpack.c.l.b16 %v366
    %v767 = vunpack.c.h.b16 %v366
    %v768 = vunpack.c.l.b16 %v367
    %v769 = vunpack.c.h.b16 %v367
    %v770 = vunpack.c.l.b16 %v368
    %v771 = vunpack.c.h.b16 %v368
    %v772 = vunpack.c.l.b16 %v369
    %v773 = vunpack.c.h.b16 %v369
    %v774 = vunpack.c.l.b16 %v370
    %v775 = vunpack.c.h.b16 %v370
    %v776 = vunpack.c.l.b16 %v371
    %v777 = vunpack.c.h.b16 %v371
    %v778 = vpack.c.b16 %v526, %v522
    %v779 = vpack.c.b16 %v527, %v523
    %v780 = vpack.c.b16 %v528, %v524
    %v781 = vpack.c.b16 %v529, %v525
    %v782 = vpack.c.b16 %v534, %v530
    %v783 = vpack.c.b16 %v535, %v531
    %v784 = vpack.c.b16 %v536, %v532
    %v785 = vpack.c.b16 %v537, %v533
    %v786 = vpack.c.b16 %v542, %v538
    %v787 = vpack.c.b16 %v543, %v539
    %v788 = vpack.c.b16 %v544, %v540
    %v789 = vpack.c.b16 %v545, %v541
    %v790 = vpack.c.b16 %v550, %v546
    %v791 = vpack.c.b16 %v551, %v547
    %v792 = vpack.c.b16 %v552, %v548
    %v793 = vpack.c.b16 %v553, %v549
    %v794 = vpack.c.b16 %v558, %v554
    %v795 = vpack.c.b16 %v559, %v555
    %v796 = vpack.c.b16 %v560, %v556
    %v797 = vpack.c.b16 %v561, %v557
    %v798 = vpack.c.b16 %v566, %v562
    %v799 = vpack.c.b16 %v567, %v563
    %v800 = vpack.c.b16 %v568, %v564
    %v801 = vpack.c.b16 %v569, %v565
    %v802 = vpack.c.b16 %v574, %v570
    %v803 = vpack.c.b16 %v575, %v571
    %v804 = vpack.c.b16 %v576, %v572
    %v805 = vpack.c.b16 %v577, %v573
    %v806 = vpack.c.b16 %v582, %v578
    %v807 = vpack.c.b16 %v583, %v579
    %v808 = vpack.c.b16 %v584, %v580
    %v809 = vpack.c.b16 %v585, %v581
    %v810 = vpack.c.b16 %v590, %v586
    %v811 = vpack.c.b16 %v591, %v587
    %v812 = vpack.c.b16 %v592, %v588
    %v813 = vpack.c.b16 %v593, %v589
    %v814 = vpack.c.b16 %v598, %v594
    %v815 = vpack.c.b16 %v599, %v595
    %v816 = vpack.c.b16 %v600, %v596
    %v817 = vpack.c.b16 %v601, %v597
    %v818 = vpack.c.b16 %v606, %v602
    %v819 = vpack.c.b16 %v607, %v603
    %v820 = vpack.c.b16 %v608, %v604
    %v821 = vpack.c.b16 %v609, %v605
    %v822 = vpack.c.b16 %v614, %v610
    %v823 = vpack.c.b16 %v615, %v611
    %v824 = vpack.c.b16 %v616, %v612
    %v825 = vpack.c.b16 %v617, %v613
    %v826 = vpack.c.b16 %v622, %v618
    %v827 = vpack.c.b16 %v623, %v619
    %v828 = vpack.c.b16 %v624, %v620
    %v829 = vpack.c.b16 %v625, %v621
    %v830 = vpack.c.b16 %v630, %v626
    %v831 = vpack.c.b16 %v631, %v627
    %v832 = vpack.c.b16 %v632, %v628
    %v833 = vpack.c.b16 %v633, %v629
    %v834 = vpack.c.b16 %v638, %v634
    %v835 = vpack.c.b16 %v639, %v635
    %v836 = vpack.c.b16 %v640, %v636
    %v837 = vpack.c.b16 %v641, %v637
    %v838 = vpack.c.b16 %v646, %v642
    %v839 = vpack.c.b16 %v647, %v643
    %v840 = vpack.c.b16 %v648, %v644
    %v841 = vpack.c.b16 %v649, %v645
    %v842 = vpack.c.b16 %v654, %v650
    %v843 = vpack.c.b16 %v655, %v651
    %v844 = vpack.c.b16 %v656, %v652
    %v845 = vpack.c.b16 %v657, %v653
    %v846 = vpack.c.b16 %v662, %v658
    %v847 = vpack.c.b16 %v663, %v659
    %v848 = vpack.c.b16 %v664, %v660
    %v849 = vpack.c.b16 %v665, %v661
    %v850 = vpack.c.b16 %v670, %v666
    %v851 = vpack.c.b16 %v671, %v667
    %v852 = vpack.c.b16 %v672, %v668
    %v853 = vpack.c.b16 %v673, %v669
    %v854 = vpack.c.b16 %v678, %v674
    %v855 = vpack.c.b16 %v679, %v675
    %v856 = vpack.c.b16 %v680, %v676
    %v857 = vpack.c.b16 %v681, %v677
    %v858 = vpack.c.b16 %v686, %v682
    %v859 = vpack.c.b16 %v687, %v683
    %v860 = vpack.c.b16 %v688, %v684
    %v861 = vpack.c.b16 %v689, %v685
    %v862 = vpack.c.b16 %v694, %v690
    %v863 = vpack.c.b16 %v695, %v691
    %v864 = vpack.c.b16 %v696, %v692
    %v865 = vpack.c.b16 %v697, %v693
    %v866 = vpack.c.b16 %v702, %v698
    %v867 = vpack.c.b16 %v703, %v699
    %v868 = vpack.c.b16 %v704, %v700
    %v869 = vpack.c.b16 %v705, %v701
    %v870 = vpack.c.b16 %v710, %v706
    %v871 = vpack.c.b16 %v711, %v707
    %v872 = vpack.c.b16 %v712, %v708
    %v873 = vpack.c.b16 %v713, %v709
    %v874 = vpack.c.b16 %v718, %v714
    %v875 = vpack.c.b16 %v719, %v715
    %v876 = vpack.c.b16 %v720, %v716
    %v877 = vpack.c.b16 %v721, %v717
    %v878 = vpack.c.b16 %v726, %v722
    %v879 = vpack.c.b16 %v727, %v723
    %v880 = vpack.c.b16 %v728, %v724
    %v881 = vpack.c.b16 %v729, %v725
    %v882 = vpack.c.b16 %v734, %v730
    %v883 = vpack.c.b16 %v735, %v731
    %v884 = vpack.c.b16 %v736, %v732
    %v885 = vpack.c.b16 %v737, %v733
    %v886 = vpack.c.b16 %v742, %v738
    %v887 = vpack.c.b16 %v743, %v739
    %v888 = vpack.c.b16 %v744, %v740
    %v889 = vpack.c.b16 %v745, %v741
    %v890 = vpack.c.b16 %v750, %v746
    %v891 = vpack.c.b16 %v751, %v747
    %v892 = vpack.c.b16 %v752, %v748
    %v893 = vpack.c.b16 %v753, %v749
    %v894 = vpack.c.b16 %v758, %v754
    %v895 = vpack.c.b16 %v759, %v755
    %v896 = vpack.c.b16 %v760, %v756
    %v897 = vpack.c.b16 %v761, %v757
    %v898 = vpack.c.b16 %v766, %v762
    %v899 = vpack.c.b16 %v767, %v763
    %v900 = vpack.c.b16 %v768, %v764
    %v901 = vpack.c.b16 %v769, %v765
    %v902 = vpack.c.b16 %v774, %v770
    %v903 = vpack.c.b16 %v775, %v771
    %v904 = vpack.c.b16 %v776, %v772
    %v905 = vpack.c.b16 %v777, %v773
    %1034 = vmatprep.subr.bf16.mxu0 %v779
    %1035 = vmatpush1.bf16.msra.mxu0 %v778
    %1036 = vmatprep.subr.bf16.mxu0 %v783
    %1037 = vmatpush1.bf16.msra.mxu0 %v782
    %1038 = vmatprep.subr.bf16.mxu0 %v787
    %1039 = vmatpush1.bf16.msra.mxu0 %v786
    %1040 = vmatprep.subr.bf16.mxu0 %v791
    %1041 = vmatpush1.bf16.msra.mxu0 %v790
    %1042 = vmatprep.subr.bf16.mxu0 %v795
    %1043 = vmatpush1.bf16.msra.mxu0 %v794
    %1044 = vmatprep.subr.bf16.mxu0 %v799
    %1045 = vmatpush1.bf16.msra.mxu0 %v798
    %1046 = vmatprep.subr.bf16.mxu0 %v803
    %1047 = vmatpush1.bf16.msra.mxu0 %v802
    %1048 = vmatprep.subr.bf16.mxu0 %v807
    %1049 = vmatpush1.bf16.msra.mxu0 %v806
    %1050 = vmatprep.subr.bf16.mxu0 %v811
    %1051 = vmatpush1.bf16.msra.mxu0 %v810
    %1052 = vmatprep.subr.bf16.mxu0 %v815
    %1053 = vmatpush1.bf16.msra.mxu0 %v814
    %1054 = vmatprep.subr.bf16.mxu0 %v819
    %1055 = vmatpush1.bf16.msra.mxu0 %v818
    %1056 = vmatprep.subr.bf16.mxu0 %v823
    %1057 = vmatpush1.bf16.msra.mxu0 %v822
    %1058 = vmatprep.subr.bf16.mxu0 %v827
    %1059 = vmatpush1.bf16.msra.mxu0 %v826
    %1060 = vmatprep.subr.bf16.mxu0 %v831
    %1061 = vmatpush1.bf16.msra.mxu0 %v830
    %1062 = vmatprep.subr.bf16.mxu0 %v835
    %1063 = vmatpush1.bf16.msra.mxu0 %v834
    %1064 = vmatprep.subr.bf16.mxu0 %v839
    %1065 = vmatpush1.bf16.msra.mxu0 %v838
    %1066 = vmatprep.mubr.bf16.mxu0 %v241
    %1067 = vmatmul.mubr.bf16.gmra.mrb[0].mxu0 %v240
    %v1068 = vpop.f32.mrb[0].mxu0
    %v1069 = vadd.f32 %v377, %v1068
    %v1070 = vpop.f32.mrb[0].mxu0
    %v1071 = vadd.f32 %v381, %v1070
    %v1072 = vpop.f32.mrb[0].mxu0
    %v1073 = vpop.f32.mrb[0].mxu0
    %1074 = vdwg.mxu0
    %1075 = vmatprep.subr.bf16.mxu0 %v843
    %1076 = vmatpush1.bf16.msra.mxu0 %v842
    %1077 = vmatprep.subr.bf16.mxu0 %v847
    %1078 = vmatpush1.bf16.msra.mxu0 %v846
    %1079 = vmatprep.subr.bf16.mxu0 %v851
    %1080 = vmatpush1.bf16.msra.mxu0 %v850
    %1081 = vmatprep.subr.bf16.mxu0 %v855
    %1082 = vmatpush1.bf16.msra.mxu0 %v854
    %1083 = vmatprep.subr.bf16.mxu0 %v859
    %1084 = vmatpush1.bf16.msra.mxu0 %v858
    %1085 = vmatprep.subr.bf16.mxu0 %v863
    %1086 = vmatpush1.bf16.msra.mxu0 %v862
    %1087 = vmatprep.subr.bf16.mxu0 %v867
    %1088 = vmatpush1.bf16.msra.mxu0 %v866
    %1089 = vmatprep.subr.bf16.mxu0 %v871
    %1090 = vmatpush1.bf16.msra.mxu0 %v870
    %1091 = vmatprep.subr.bf16.mxu0 %v875
    %1092 = vmatpush1.bf16.msra.mxu0 %v874
    %1093 = vmatprep.subr.bf16.mxu0 %v879
    %1094 = vmatpush1.bf16.msra.mxu0 %v878
    %1095 = vmatprep.subr.bf16.mxu0 %v883
    %1096 = vmatpush1.bf16.msra.mxu0 %v882
    %1097 = vmatprep.subr.bf16.mxu0 %v887
    %1098 = vmatpush1.bf16.msra.mxu0 %v886
    %1099 = vmatprep.subr.bf16.mxu0 %v891
    %1100 = vmatpush1.bf16.msra.mxu0 %v890
    %1101 = vmatprep.subr.bf16.mxu0 %v895
    %1102 = vmatpush1.bf16.msra.mxu0 %v894
    %1103 = vmatprep.subr.bf16.mxu0 %v899
    %1104 = vmatpush1.bf16.msra.mxu0 %v898
    %1105 = vmatprep.subr.bf16.mxu0 %v903
    %1106 = vmatpush1.bf16.msra.mxu0 %v902
    %1107 = vmatprep.mubr.bf16.mxu0 %v243
    %1108 = vmatmul.mubr.bf16.gmra.mrb[0].mxu0 %v242
    %v1109 = vpop.f32.mrb[0].mxu0
    %v1110 = vadd.f32 %v1069, %v1109
    %v1111 = vpop.f32.mrb[0].mxu0
    %v1112 = vadd.f32 %v1071, %v1111
    %v1113 = vpop.f32.mrb[0].mxu0
    %v1114 = vpop.f32.mrb[0].mxu0
    %1115 = vdwg.mxu0
    %1116 = vmatprep.subr.bf16.mxu0 %v781
    %1117 = vmatpush1.bf16.msra.mxu0 %v780
    %1118 = vmatprep.subr.bf16.mxu0 %v785
    %1119 = vmatpush1.bf16.msra.mxu0 %v784
    %1120 = vmatprep.subr.bf16.mxu0 %v789
    %1121 = vmatpush1.bf16.msra.mxu0 %v788
    %1122 = vmatprep.subr.bf16.mxu0 %v793
    %1123 = vmatpush1.bf16.msra.mxu0 %v792
    %1124 = vmatprep.subr.bf16.mxu0 %v797
    %1125 = vmatpush1.bf16.msra.mxu0 %v796
    %1126 = vmatprep.subr.bf16.mxu0 %v801
    %1127 = vmatpush1.bf16.msra.mxu0 %v800
    %1128 = vmatprep.subr.bf16.mxu0 %v805
    %1129 = vmatpush1.bf16.msra.mxu0 %v804
    %1130 = vmatprep.subr.bf16.mxu0 %v809
    %1131 = vmatpush1.bf16.msra.mxu0 %v808
    %1132 = vmatprep.subr.bf16.mxu0 %v813
    %1133 = vmatpush1.bf16.msra.mxu0 %v812
    %1134 = vmatprep.subr.bf16.mxu0 %v817
    %1135 = vmatpush1.bf16.msra.mxu0 %v816
    %1136 = vmatprep.subr.bf16.mxu0 %v821
    %1137 = vmatpush1.bf16.msra.mxu0 %v820
    %1138 = vmatprep.subr.bf16.mxu0 %v825
    %1139 = vmatpush1.bf16.msra.mxu0 %v824
    %1140 = vmatprep.subr.bf16.mxu0 %v829
    %1141 = vmatpush1.bf16.msra.mxu0 %v828
    %1142 = vmatprep.subr.bf16.mxu0 %v833
    %1143 = vmatpush1.bf16.msra.mxu0 %v832
    %1144 = vmatprep.subr.bf16.mxu0 %v837
    %1145 = vmatpush1.bf16.msra.mxu0 %v836
    %1146 = vmatprep.subr.bf16.mxu0 %v841
    %1147 = vmatpush1.bf16.msra.mxu0 %v840
    %1148 = vmatprep.mubr.bf16.mxu0 %v241
    %1149 = vmatmul.mubr.bf16.gmra.mrb[0].mxu0 %v240
    %v1150 = vpop.f32.mrb[0].mxu0
    %v1151 = vadd.f32 %v385, %v1150
    %v1152 = vpop.f32.mrb[0].mxu0
    %v1153 = vadd.f32 %v389, %v1152
    %v1154 = vpop.f32.mrb[0].mxu0
    %v1155 = vpop.f32.mrb[0].mxu0
    %1156 = vdwg.mxu0
    %1157 = vmatprep.subr.bf16.mxu0 %v845
    %1158 = vmatpush1.bf16.msra.mxu0 %v844
    %1159 = vmatprep.subr.bf16.mxu0 %v849
    %1160 = vmatpush1.bf16.msra.mxu0 %v848
    %1161 = vmatprep.subr.bf16.mxu0 %v853
    %1162 = vmatpush1.bf16.msra.mxu0 %v852
    %1163 = vmatprep.subr.bf16.mxu0 %v857
    %1164 = vmatpush1.bf16.msra.mxu0 %v856
    %1165 = vmatprep.subr.bf16.mxu0 %v861
    %1166 = vmatpush1.bf16.msra.mxu0 %v860
    %1167 = vmatprep.subr.bf16.mxu0 %v865
    %1168 = vmatpush1.bf16.msra.mxu0 %v864
    %1169 = vmatprep.subr.bf16.mxu0 %v869
    %1170 = vmatpush1.bf16.msra.mxu0 %v868
    %1171 = vmatprep.subr.bf16.mxu0 %v873
    %1172 = vmatpush1.bf16.msra.mxu0 %v872
    %1173 = vmatprep.subr.bf16.mxu0 %v877
    %1174 = vmatpush1.bf16.msra.mxu0 %v876
    %1175 = vmatprep.subr.bf16.mxu0 %v881
    %1176 = vmatpush1.bf16.msra.mxu0 %v880
    %1177 = vmatprep.subr.bf16.mxu0 %v885
    %1178 = vmatpush1.bf16.msra.mxu0 %v884
    %1179 = vmatprep.subr.bf16.mxu0 %v889
    %1180 = vmatpush1.bf16.msra.mxu0 %v888
    %1181 = vmatprep.subr.bf16.mxu0 %v893
    %1182 = vmatpush1.bf16.msra.mxu0 %v892
    %1183 = vmatprep.subr.bf16.mxu0 %v897
    %1184 = vmatpush1.bf16.msra.mxu0 %v896
    %1185 = vmatprep.subr.bf16.mxu0 %v901
    %1186 = vmatpush1.bf16.msra.mxu0 %v900
    %1187 = vmatprep.subr.bf16.mxu0 %v905
    %1188 = vmatpush1.bf16.msra.mxu0 %v904
    %1189 = vmatprep.mubr.bf16.mxu0 %v243
    %1190 = vmatmul.mubr.bf16.gmra.mrb[0].mxu0 %v242
    %v1191 = vpop.f32.mrb[0].mxu0
    %v1192 = vadd.f32 %v1151, %v1191
    %v1193 = vpop.f32.mrb[0].mxu0
    %v1194 = vadd.f32 %v1153, %v1193
    %v1195 = vpop.f32.mrb[0].mxu0
    %v1196 = vpop.f32.mrb[0].mxu0
    %1197 = vdwg.mxu0
    %v1198 = vmax.f32 %v1110, 0.0
    %v1199 = vmax.f32 %v1112, 0.0
    %v1200 = vmax.f32 %v1192, 0.0
    %v1201 = vmax.f32 %v1194, 0.0
    %v1202 = vpack.c.bf16 %v1198, %v1198
    %v1203 = vpack.c.bf16 %v1199, %v1199
    %v1204 = vpack.c.bf16 %v1200, %v1200
    %v1205 = vpack.c.bf16 %v1201, %v1201
    %v1206 = vld [vmem:[#allocation7] sm:$0xff]
    %v1207 = vld [vmem:[#allocation7 + $0x8] sm:$0xf]
    %v1208 = vld [vmem:[#allocation7 + $0xc] sm:$0xff]
    %v1209 = vld [vmem:[#allocation7 + $0x14] sm:$0xf]
    %v1210 = vld [vmem:[#allocation7 + $0x18] sm:$0xff]
    %v1211 = vld [vmem:[#allocation7 + $0x20] sm:$0xf]
    %v1212 = vld [vmem:[#allocation7 + $0x24] sm:$0xff]
    %v1213 = vld [vmem:[#allocation7 + $0x2c] sm:$0xf]
    %v1214 = vld [vmem:[#allocation7 + $0x30] sm:$0xff]
    %v1215 = vld [vmem:[#allocation7 + $0x38] sm:$0xf]
    %v1216 = vld [vmem:[#allocation7 + $0x3c] sm:$0xff]
    %v1217 = vld [vmem:[#allocation7 + $0x44] sm:$0xf]
    %v1218 = vld [vmem:[#allocation7 + $0x48] sm:$0xff]
    %v1219 = vld [vmem:[#allocation7 + $0x50] sm:$0xf]
    %v1220 = vld [vmem:[#allocation7 + $0x54] sm:$0xff]
    %v1221 = vld [vmem:[#allocation7 + $0x5c] sm:$0xf]
    %v1222 = vld [vmem:[#allocation7 + $0x60] sm:$0xff]
    %v1223 = vld [vmem:[#allocation7 + $0x68] sm:$0xf]
    %v1224 = vld [vmem:[#allocation7 + $0x6c] sm:$0xff]
    %v1225 = vld [vmem:[#allocation7 + $0x74] sm:$0xf]
    %v1226 = vld [vmem:[#allocation7 + $0x78] sm:$0xff]
    %v1227 = vld [vmem:[#allocation7 + $0x80] sm:$0xf]
    %v1228 = vld [vmem:[#allocation7 + $0x84] sm:$0xff]
    %v1229 = vld [vmem:[#allocation7 + $0x8c] sm:$0xf]
    %v1230 = vld [vmem:[#allocation7 + $0x90] sm:$0xff]
    %v1231 = vld [vmem:[#allocation7 + $0x98] sm:$0xf]
    %v1232 = vld [vmem:[#allocation7 + $0x9c] sm:$0xff]
    %v1233 = vld [vmem:[#allocation7 + $0xa4] sm:$0xf]
    %v1234 = vld [vmem:[#allocation7 + $0xa8] sm:$0xff]
    %v1235 = vld [vmem:[#allocation7 + $0xb0] sm:$0xf]
    %v1236 = vld [vmem:[#allocation7 + $0xb4] sm:$0xff]
    %v1237 = vld [vmem:[#allocation7 + $0xbc] sm:$0xf]
    %v1238 = vld [vmem:[#allocation7 + $0xc0] sm:$0xff]
    %v1239 = vld [vmem:[#allocation7 + $0xc8] sm:$0xf]
    %v1240 = vld [vmem:[#allocation7 + $0xcc] sm:$0xff]
    %v1241 = vld [vmem:[#allocation7 + $0xd4] sm:$0xf]
    %v1242 = vld [vmem:[#allocation7 + $0xd8] sm:$0xff]
    %v1243 = vld [vmem:[#allocation7 + $0xe0] sm:$0xf]
    %v1244 = vld [vmem:[#allocation7 + $0xe4] sm:$0xff]
    %v1245 = vld [vmem:[#allocation7 + $0xec] sm:$0xf]
    %v1246 = vld [vmem:[#allocation7 + $0xf0] sm:$0xff]
    %v1247 = vld [vmem:[#allocation7 + $0xf8] sm:$0xf]
    %v1248 = vld [vmem:[#allocation7 + $0xfc] sm:$0xff]
    %v1249 = vld [vmem:[#allocation7 + $0x104] sm:$0xf]
    %v1250 = vld [vmem:[#allocation7 + $0x108] sm:$0xff]
    %v1251 = vld [vmem:[#allocation7 + $0x110] sm:$0xf]
    %v1252 = vld [vmem:[#allocation7 + $0x114] sm:$0xff]
    %v1253 = vld [vmem:[#allocation7 + $0x11c] sm:$0xf]
    %v1254 = vld [vmem:[#allocation7 + $0x120] sm:$0xff]
    %v1255 = vld [vmem:[#allocation7 + $0x128] sm:$0xf]
    %v1256 = vld [vmem:[#allocation7 + $0x12c] sm:$0xff]
    %v1257 = vld [vmem:[#allocation7 + $0x134] sm:$0xf]
    %v1258 = vld [vmem:[#allocation7 + $0x138] sm:$0xff]
    %v1259 = vld [vmem:[#allocation7 + $0x140] sm:$0xf]
    %v1260 = vld [vmem:[#allocation7 + $0x144] sm:$0xff]
    %v1261 = vld [vmem:[#allocation7 + $0x14c] sm:$0xf]
    %v1262 = vld [vmem:[#allocation7 + $0x150] sm:$0xff]
    %v1263 = vld [vmem:[#allocation7 + $0x158] sm:$0xf]
    %v1264 = vld [vmem:[#allocation7 + $0x15c] sm:$0xff]
    %v1265 = vld [vmem:[#allocation7 + $0x164] sm:$0xf]
    %v1266 = vld [vmem:[#allocation7 + $0x168] sm:$0xff]
    %v1267 = vld [vmem:[#allocation7 + $0x170] sm:$0xf]
    %v1268 = vld [vmem:[#allocation7 + $0x174] sm:$0xff]
    %v1269 = vld [vmem:[#allocation7 + $0x17c] sm:$0xf]
    %v1270 = vld [vmem:[#allocation7 + $0x180] sm:$0xff]
    %v1271 = vld [vmem:[#allocation7 + $0x188] sm:$0xf]
    %v1272 = vld [vmem:[#allocation7 + $0x18c] sm:$0xff]
    %v1273 = vld [vmem:[#allocation7 + $0x194] sm:$0xf]
    %v1274 = vld [vmem:[#allocation7 + $0x198] sm:$0xff]
    %v1275 = vld [vmem:[#allocation7 + $0x1a0] sm:$0xf]
    %v1276 = vld [vmem:[#allocation7 + $0x1a4] sm:$0xff]
    %v1277 = vld [vmem:[#allocation7 + $0x1ac] sm:$0xf]
    %v1278 = vld [vmem:[#allocation7 + $0x1b0] sm:$0xff]
    %v1279 = vld [vmem:[#allocation7 + $0x1b8] sm:$0xf]
    %v1280 = vld [vmem:[#allocation7 + $0x1bc] sm:$0xff]
    %v1281 = vld [vmem:[#allocation7 + $0x1c4] sm:$0xf]
    %v1282 = vld [vmem:[#allocation7 + $0x1c8] sm:$0xff]
    %v1283 = vld [vmem:[#allocation7 + $0x1d0] sm:$0xf]
    %v1284 = vld [vmem:[#allocation7 + $0x1d4] sm:$0xff]
    %v1285 = vld [vmem:[#allocation7 + $0x1dc] sm:$0xf]
    %v1286 = vld [vmem:[#allocation7 + $0x1e0] sm:$0xff]
    %v1287 = vld [vmem:[#allocation7 + $0x1e8] sm:$0xf]
    %v1288 = vld [vmem:[#allocation7 + $0x1ec] sm:$0xff]
    %v1289 = vld [vmem:[#allocation7 + $0x1f4] sm:$0xf]
    %v1290 = vld [vmem:[#allocation7 + $0x1f8] sm:$0xff]
    %v1291 = vld [vmem:[#allocation7 + $0x200] sm:$0xf]
    %v1292 = vld [vmem:[#allocation7 + $0x204] sm:$0xff]
    %v1293 = vld [vmem:[#allocation7 + $0x20c] sm:$0xf]
    %v1294 = vld [vmem:[#allocation7 + $0x210] sm:$0xff]
    %v1295 = vld [vmem:[#allocation7 + $0x218] sm:$0xf]
    %v1296 = vld [vmem:[#allocation7 + $0x21c] sm:$0xff]
    %v1297 = vld [vmem:[#allocation7 + $0x224] sm:$0xf]
    %v1298 = vld [vmem:[#allocation7 + $0x228] sm:$0xff]
    %v1299 = vld [vmem:[#allocation7 + $0x230] sm:$0xf]
    %v1300 = vld [vmem:[#allocation7 + $0x234] sm:$0xff]
    %v1301 = vld [vmem:[#allocation7 + $0x23c] sm:$0xf]
    %v1302 = vld [vmem:[#allocation7 + $0x240] sm:$0xff]
    %v1303 = vld [vmem:[#allocation7 + $0x248] sm:$0xf]
    %v1304 = vld [vmem:[#allocation7 + $0x24c] sm:$0xff]
    %v1305 = vld [vmem:[#allocation7 + $0x254] sm:$0xf]
    %v1306 = vld [vmem:[#allocation7 + $0x258] sm:$0xff]
    %v1307 = vld [vmem:[#allocation7 + $0x260] sm:$0xf]
    %v1308 = vld [vmem:[#allocation7 + $0x264] sm:$0xff]
    %v1309 = vld [vmem:[#allocation7 + $0x26c] sm:$0xf]
    %v1310 = vld [vmem:[#allocation7 + $0x270] sm:$0xff]
    %v1311 = vld [vmem:[#allocation7 + $0x278] sm:$0xf]
    %v1312 = vld [vmem:[#allocation7 + $0x27c] sm:$0xff]
    %v1313 = vld [vmem:[#allocation7 + $0x284] sm:$0xf]
    %v1314 = vld [vmem:[#allocation7 + $0x288] sm:$0xff]
    %v1315 = vld [vmem:[#allocation7 + $0x290] sm:$0xf]
    %v1316 = vld [vmem:[#allocation7 + $0x294] sm:$0xff]
    %v1317 = vld [vmem:[#allocation7 + $0x29c] sm:$0xf]
    %v1318 = vld [vmem:[#allocation7 + $0x2a0] sm:$0xff]
    %v1319 = vld [vmem:[#allocation7 + $0x2a8] sm:$0xf]
    %v1320 = vld [vmem:[#allocation7 + $0x2ac] sm:$0xff]
    %v1321 = vld [vmem:[#allocation7 + $0x2b4] sm:$0xf]
    %v1322 = vld [vmem:[#allocation7 + $0x2b8] sm:$0xff]
    %v1323 = vld [vmem:[#allocation7 + $0x2c0] sm:$0xf]
    %v1324 = vld [vmem:[#allocation7 + $0x2c4] sm:$0xff]
    %v1325 = vld [vmem:[#allocation7 + $0x2cc] sm:$0xf]
    %v1326 = vld [vmem:[#allocation7 + $0x2d0] sm:$0xff]
    %v1327 = vld [vmem:[#allocation7 + $0x2d8] sm:$0xf]
    %v1328 = vld [vmem:[#allocation7 + $0x2dc] sm:$0xff]
    %v1329 = vld [vmem:[#allocation7 + $0x2e4] sm:$0xf]
    %v1330 = vld [vmem:[#allocation7 + $0x2e8] sm:$0xff]
    %v1331 = vld [vmem:[#allocation7 + $0x2f0] sm:$0xf]
    %v1332 = vld [vmem:[#allocation7 + $0x2f4] sm:$0xff]
    %v1333 = vld [vmem:[#allocation7 + $0x2fc] sm:$0xf]
    %v1334 = vld [vmem:[%s7] sm:$0x7]
    %v1336 = vlaneseq
    %v1337 = vshrl.u32 %v1336, 7
    %v1338 = vsub.s32 0, %v1337
    %v1339 = vrot.slane %v1334, %v1338
    %v1340 = vlaneseq
    %v1341 = vshrl.u32 %v1340, 7
    %v1342 = vsub.s32 1, %v1341
    %v1343 = vrot.slane %v1334, %v1342
    %v1344 = vlaneseq
    %v1345 = vshrl.u32 %v1344, 7
    %v1346 = vsub.s32 2, %v1345
    %v1347 = vrot.slane %v1334, %v1346
    %v1479 = vunpack.c.l.b16 %v1206
    %v1480 = vunpack.c.h.b16 %v1206
    %v1481 = vunpack.c.l.b16 %v1207
    %v1482 = vunpack.c.l.b16 %v1208
    %v1483 = vunpack.c.h.b16 %v1208
    %v1484 = vunpack.c.l.b16 %v1209
    %v1485 = vunpack.c.l.b16 %v1210
    %v1486 = vunpack.c.h.b16 %v1210
    %v1487 = vunpack.c.l.b16 %v1211
    %v1488 = vunpack.c.l.b16 %v1212
    %v1489 = vunpack.c.h.b16 %v1212
    %v1490 = vunpack.c.l.b16 %v1213
    %v1491 = vunpack.c.l.b16 %v1214
    %v1492 = vunpack.c.h.b16 %v1214
    %v1493 = vunpack.c.l.b16 %v1215
    %v1494 = vunpack.c.l.b16 %v1216
    %v1495 = vunpack.c.h.b16 %v1216
    %v1496 = vunpack.c.l.b16 %v1217
    %v1497 = vunpack.c.l.b16 %v1218
    %v1498 = vunpack.c.h.b16 %v1218
    %v1499 = vunpack.c.l.b16 %v1219
    %v1500 = vunpack.c.l.b16 %v1220
    %v1501 = vunpack.c.h.b16 %v1220
    %v1502 = vunpack.c.l.b16 %v1221
    %v1503 = vunpack.c.l.b16 %v1222
    %v1504 = vunpack.c.h.b16 %v1222
    %v1505 = vunpack.c.l.b16 %v1223
    %v1506 = vunpack.c.l.b16 %v1224
    %v1507 = vunpack.c.h.b16 %v1224
    %v1508 = vunpack.c.l.b16 %v1225
    %v1509 = vunpack.c.l.b16 %v1226
    %v1510 = vunpack.c.h.b16 %v1226
    %v1511 = vunpack.c.l.b16 %v1227
    %v1512 = vunpack.c.l.b16 %v1228
    %v1513 = vunpack.c.h.b16 %v1228
    %v1514 = vunpack.c.l.b16 %v1229
    %v1515 = vunpack.c.l.b16 %v1230
    %v1516 = vunpack.c.h.b16 %v1230
    %v1517 = vunpack.c.l.b16 %v1231
    %v1518 = vunpack.c.l.b16 %v1232
    %v1519 = vunpack.c.h.b16 %v1232
    %v1520 = vunpack.c.l.b16 %v1233
    %v1521 = vunpack.c.l.b16 %v1234
    %v1522 = vunpack.c.h.b16 %v1234
    %v1523 = vunpack.c.l.b16 %v1235
    %v1524 = vunpack.c.l.b16 %v1236
    %v1525 = vunpack.c.h.b16 %v1236
    %v1526 = vunpack.c.l.b16 %v1237
    %v1527 = vunpack.c.l.b16 %v1238
    %v1528 = vunpack.c.h.b16 %v1238
    %v1529 = vunpack.c.l.b16 %v1239
    %v1530 = vunpack.c.l.b16 %v1240
    %v1531 = vunpack.c.h.b16 %v1240
    %v1532 = vunpack.c.l.b16 %v1241
    %v1533 = vunpack.c.l.b16 %v1242
    %v1534 = vunpack.c.h.b16 %v1242
    %v1535 = vunpack.c.l.b16 %v1243
    %v1536 = vunpack.c.l.b16 %v1244
    %v1537 = vunpack.c.h.b16 %v1244
    %v1538 = vunpack.c.l.b16 %v1245
    %v1539 = vunpack.c.l.b16 %v1246
    %v1540 = vunpack.c.h.b16 %v1246
    %v1541 = vunpack.c.l.b16 %v1247
    %v1542 = vunpack.c.l.b16 %v1248
    %v1543 = vunpack.c.h.b16 %v1248
    %v1544 = vunpack.c.l.b16 %v1249
    %v1545 = vunpack.c.l.b16 %v1250
    %v1546 = vunpack.c.h.b16 %v1250
    %v1547 = vunpack.c.l.b16 %v1251
    %v1548 = vunpack.c.l.b16 %v1252
    %v1549 = vunpack.c.h.b16 %v1252
    %v1550 = vunpack.c.l.b16 %v1253
    %v1551 = vunpack.c.l.b16 %v1254
    %v1552 = vunpack.c.h.b16 %v1254
    %v1553 = vunpack.c.l.b16 %v1255
    %v1554 = vunpack.c.l.b16 %v1256
    %v1555 = vunpack.c.h.b16 %v1256
    %v1556 = vunpack.c.l.b16 %v1257
    %v1557 = vunpack.c.l.b16 %v1258
    %v1558 = vunpack.c.h.b16 %v1258
    %v1559 = vunpack.c.l.b16 %v1259
    %v1560 = vunpack.c.l.b16 %v1260
    %v1561 = vunpack.c.h.b16 %v1260
    %v1562 = vunpack.c.l.b16 %v1261
    %v1563 = vunpack.c.l.b16 %v1262
    %v1564 = vunpack.c.h.b16 %v1262
    %v1565 = vunpack.c.l.b16 %v1263
    %v1566 = vunpack.c.l.b16 %v1264
    %v1567 = vunpack.c.h.b16 %v1264
    %v1568 = vunpack.c.l.b16 %v1265
    %v1569 = vunpack.c.l.b16 %v1266
    %v1570 = vunpack.c.h.b16 %v1266
    %v1571 = vunpack.c.l.b16 %v1267
    %v1572 = vunpack.c.l.b16 %v1268
    %v1573 = vunpack.c.h.b16 %v1268
    %v1574 = vunpack.c.l.b16 %v1269
    %v1575 = vunpack.c.l.b16 %v1270
    %v1576 = vunpack.c.h.b16 %v1270
    %v1577 = vunpack.c.l.b16 %v1271
    %v1578 = vunpack.c.l.b16 %v1272
    %v1579 = vunpack.c.h.b16 %v1272
    %v1580 = vunpack.c.l.b16 %v1273
    %v1581 = vunpack.c.l.b16 %v1274
    %v1582 = vunpack.c.h.b16 %v1274
    %v1583 = vunpack.c.l.b16 %v1275
    %v1584 = vunpack.c.l.b16 %v1276
    %v1585 = vunpack.c.h.b16 %v1276
    %v1586 = vunpack.c.l.b16 %v1277
    %v1587 = vunpack.c.l.b16 %v1278
    %v1588 = vunpack.c.h.b16 %v1278
    %v1589 = vunpack.c.l.b16 %v1279
    %v1590 = vunpack.c.l.b16 %v1280
    %v1591 = vunpack.c.h.b16 %v1280
    %v1592 = vunpack.c.l.b16 %v1281
    %v1593 = vunpack.c.l.b16 %v1282
    %v1594 = vunpack.c.h.b16 %v1282
    %v1595 = vunpack.c.l.b16 %v1283
    %v1596 = vunpack.c.l.b16 %v1284
    %v1597 = vunpack.c.h.b16 %v1284
    %v1598 = vunpack.c.l.b16 %v1285
    %v1599 = vunpack.c.l.b16 %v1286
    %v1600 = vunpack.c.h.b16 %v1286
    %v1601 = vunpack.c.l.b16 %v1287
    %v1602 = vunpack.c.l.b16 %v1288
    %v1603 = vunpack.c.h.b16 %v1288
    %v1604 = vunpack.c.l.b16 %v1289
    %v1605 = vunpack.c.l.b16 %v1290
    %v1606 = vunpack.c.h.b16 %v1290
    %v1607 = vunpack.c.l.b16 %v1291
    %v1608 = vunpack.c.l.b16 %v1292
    %v1609 = vunpack.c.h.b16 %v1292
    %v1610 = vunpack.c.l.b16 %v1293
    %v1611 = vunpack.c.l.b16 %v1294
    %v1612 = vunpack.c.h.b16 %v1294
    %v1613 = vunpack.c.l.b16 %v1295
    %v1614 = vunpack.c.l.b16 %v1296
    %v1615 = vunpack.c.h.b16 %v1296
    %v1616 = vunpack.c.l.b16 %v1297
    %v1617 = vunpack.c.l.b16 %v1298
    %v1618 = vunpack.c.h.b16 %v1298
    %v1619 = vunpack.c.l.b16 %v1299
    %v1620 = vunpack.c.l.b16 %v1300
    %v1621 = vunpack.c.h.b16 %v1300
    %v1622 = vunpack.c.l.b16 %v1301
    %v1623 = vunpack.c.l.b16 %v1302
    %v1624 = vunpack.c.h.b16 %v1302
    %v1625 = vunpack.c.l.b16 %v1303
    %v1626 = vunpack.c.l.b16 %v1304
    %v1627 = vunpack.c.h.b16 %v1304
    %v1628 = vunpack.c.l.b16 %v1305
    %v1629 = vunpack.c.l.b16 %v1306
    %v1630 = vunpack.c.h.b16 %v1306
    %v1631 = vunpack.c.l.b16 %v1307
    %v1632 = vunpack.c.l.b16 %v1308
    %v1633 = vunpack.c.h.b16 %v1308
    %v1634 = vunpack.c.l.b16 %v1309
    %v1635 = vunpack.c.l.b16 %v1310
    %v1636 = vunpack.c.h.b16 %v1310
    %v1637 = vunpack.c.l.b16 %v1311
    %v1638 = vunpack.c.l.b16 %v1312
    %v1639 = vunpack.c.h.b16 %v1312
    %v1640 = vunpack.c.l.b16 %v1313
    %v1641 = vunpack.c.l.b16 %v1314
    %v1642 = vunpack.c.h.b16 %v1314
    %v1643 = vunpack.c.l.b16 %v1315
    %v1644 = vunpack.c.l.b16 %v1316
    %v1645 = vunpack.c.h.b16 %v1316
    %v1646 = vunpack.c.l.b16 %v1317
    %v1647 = vunpack.c.l.b16 %v1318
    %v1648 = vunpack.c.h.b16 %v1318
    %v1649 = vunpack.c.l.b16 %v1319
    %v1650 = vunpack.c.l.b16 %v1320
    %v1651 = vunpack.c.h.b16 %v1320
    %v1652 = vunpack.c.l.b16 %v1321
    %v1653 = vunpack.c.l.b16 %v1322
    %v1654 = vunpack.c.h.b16 %v1322
    %v1655 = vunpack.c.l.b16 %v1323
    %v1656 = vunpack.c.l.b16 %v1324
    %v1657 = vunpack.c.h.b16 %v1324
    %v1658 = vunpack.c.l.b16 %v1325
    %v1659 = vunpack.c.l.b16 %v1326
    %v1660 = vunpack.c.h.b16 %v1326
    %v1661 = vunpack.c.l.b16 %v1327
    %v1662 = vunpack.c.l.b16 %v1328
    %v1663 = vunpack.c.h.b16 %v1328
    %v1664 = vunpack.c.l.b16 %v1329
    %v1665 = vunpack.c.l.b16 %v1330
    %v1666 = vunpack.c.h.b16 %v1330
    %v1667 = vunpack.c.l.b16 %v1331
    %v1668 = vunpack.c.l.b16 %v1332
    %v1669 = vunpack.c.h.b16 %v1332
    %v1670 = vunpack.c.l.b16 %v1333
    %v1671 = vpack.c.b16 %v1482, %v1479
    %v1672 = vpack.c.b16 %v1483, %v1480
    %v1673 = vpack.c.b16 %v1484, %v1481
    %v1674 = vpack.c.b16 %v1488, %v1485
    %v1675 = vpack.c.b16 %v1489, %v1486
    %v1676 = vpack.c.b16 %v1490, %v1487
    %v1677 = vpack.c.b16 %v1494, %v1491
    %v1678 = vpack.c.b16 %v1495, %v1492
    %v1679 = vpack.c.b16 %v1496, %v1493
    %v1680 = vpack.c.b16 %v1500, %v1497
    %v1681 = vpack.c.b16 %v1501, %v1498
    %v1682 = vpack.c.b16 %v1502, %v1499
    %v1683 = vpack.c.b16 %v1506, %v1503
    %v1684 = vpack.c.b16 %v1507, %v1504
    %v1685 = vpack.c.b16 %v1508, %v1505
    %v1686 = vpack.c.b16 %v1512, %v1509
    %v1687 = vpack.c.b16 %v1513, %v1510
    %v1688 = vpack.c.b16 %v1514, %v1511
    %v1689 = vpack.c.b16 %v1518, %v1515
    %v1690 = vpack.c.b16 %v1519, %v1516
    %v1691 = vpack.c.b16 %v1520, %v1517
    %v1692 = vpack.c.b16 %v1524, %v1521
    %v1693 = vpack.c.b16 %v1525, %v1522
    %v1694 = vpack.c.b16 %v1526, %v1523
    %v1695 = vpack.c.b16 %v1530, %v1527
    %v1696 = vpack.c.b16 %v1531, %v1528
    %v1697 = vpack.c.b16 %v1532, %v1529
    %v1698 = vpack.c.b16 %v1536, %v1533
    %v1699 = vpack.c.b16 %v1537, %v1534
    %v1700 = vpack.c.b16 %v1538, %v1535
    %v1701 = vpack.c.b16 %v1542, %v1539
    %v1702 = vpack.c.b16 %v1543, %v1540
    %v1703 = vpack.c.b16 %v1544, %v1541
    %v1704 = vpack.c.b16 %v1548, %v1545
    %v1705 = vpack.c.b16 %v1549, %v1546
    %v1706 = vpack.c.b16 %v1550, %v1547
    %v1707 = vpack.c.b16 %v1554, %v1551
    %v1708 = vpack.c.b16 %v1555, %v1552
    %v1709 = vpack.c.b16 %v1556, %v1553
    %v1710 = vpack.c.b16 %v1560, %v1557
    %v1711 = vpack.c.b16 %v1561, %v1558
    %v1712 = vpack.c.b16 %v1562, %v1559
    %v1713 = vpack.c.b16 %v1566, %v1563
    %v1714 = vpack.c.b16 %v1567, %v1564
    %v1715 = vpack.c.b16 %v1568, %v1565
    %v1716 = vpack.c.b16 %v1572, %v1569
    %v1717 = vpack.c.b16 %v1573, %v1570
    %v1718 = vpack.c.b16 %v1574, %v1571
    %v1719 = vpack.c.b16 %v1578, %v1575
    %v1720 = vpack.c.b16 %v1579, %v1576
    %v1721 = vpack.c.b16 %v1580, %v1577
    %v1722 = vpack.c.b16 %v1584, %v1581
    %v1723 = vpack.c.b16 %v1585, %v1582
    %v1724 = vpack.c.b16 %v1586, %v1583
    %v1725 = vpack.c.b16 %v1590, %v1587
    %v1726 = vpack.c.b16 %v1591, %v1588
    %v1727 = vpack.c.b16 %v1592, %v1589
    %v1728 = vpack.c.b16 %v1596, %v1593
    %v1729 = vpack.c.b16 %v1597, %v1594
    %v1730 = vpack.c.b16 %v1598, %v1595
    %v1731 = vpack.c.b16 %v1602, %v1599
    %v1732 = vpack.c.b16 %v1603, %v1600
    %v1733 = vpack.c.b16 %v1604, %v1601
    %v1734 = vpack.c.b16 %v1608, %v1605
    %v1735 = vpack.c.b16 %v1609, %v1606
    %v1736 = vpack.c.b16 %v1610, %v1607
    %v1737 = vpack.c.b16 %v1614, %v1611
    %v1738 = vpack.c.b16 %v1615, %v1612
    %v1739 = vpack.c.b16 %v1616, %v1613
    %v1740 = vpack.c.b16 %v1620, %v1617
    %v1741 = vpack.c.b16 %v1621, %v1618
    %v1742 = vpack.c.b16 %v1622, %v1619
    %v1743 = vpack.c.b16 %v1626, %v1623
    %v1744 = vpack.c.b16 %v1627, %v1624
    %v1745 = vpack.c.b16 %v1628, %v1625
    %v1746 = vpack.c.b16 %v1632, %v1629
    %v1747 = vpack.c.b16 %v1633, %v1630
    %v1748 = vpack.c.b16 %v1634, %v1631
    %v1749 = vpack.c.b16 %v1638, %v1635
    %v1750 = vpack.c.b16 %v1639, %v1636
    %v1751 = vpack.c.b16 %v1640, %v1637
    %v1752 = vpack.c.b16 %v1644, %v1641
    %v1753 = vpack.c.b16 %v1645, %v1642
    %v1754 = vpack.c.b16 %v1646, %v1643
    %v1755 = vpack.c.b16 %v1650, %v1647
    %v1756 = vpack.c.b16 %v1651, %v1648
    %v1757 = vpack.c.b16 %v1652, %v1649
    %v1758 = vpack.c.b16 %v1656, %v1653
    %v1759 = vpack.c.b16 %v1657, %v1654
    %v1760 = vpack.c.b16 %v1658, %v1655
    %v1761 = vpack.c.b16 %v1662, %v1659
    %v1762 = vpack.c.b16 %v1663, %v1660
    %v1763 = vpack.c.b16 %v1664, %v1661
    %v1764 = vpack.c.b16 %v1668, %v1665
    %v1765 = vpack.c.b16 %v1669, %v1666
    %v1766 = vpack.c.b16 %v1670, %v1667
    %1863 = vmatprep.subr.bf16.mxu0 %v1672
    %1864 = vmatpush1.bf16.msra.mxu0 %v1671
    %1865 = vmatprep.subr.bf16.mxu0 %v1675
    %1866 = vmatpush1.bf16.msra.mxu0 %v1674
    %1867 = vmatprep.subr.bf16.mxu0 %v1678
    %1868 = vmatpush1.bf16.msra.mxu0 %v1677
    %1869 = vmatprep.subr.bf16.mxu0 %v1681
    %1870 = vmatpush1.bf16.msra.mxu0 %v1680
    %1871 = vmatprep.subr.bf16.mxu0 %v1684
    %1872 = vmatpush1.bf16.msra.mxu0 %v1683
    %1873 = vmatprep.subr.bf16.mxu0 %v1687
    %1874 = vmatpush1.bf16.msra.mxu0 %v1686
    %1875 = vmatprep.subr.bf16.mxu0 %v1690
    %1876 = vmatpush1.bf16.msra.mxu0 %v1689
    %1877 = vmatprep.subr.bf16.mxu0 %v1693
    %1878 = vmatpush1.bf16.msra.mxu0 %v1692
    %1879 = vmatprep.subr.bf16.mxu0 %v1696
    %1880 = vmatpush1.bf16.msra.mxu0 %v1695
    %1881 = vmatprep.subr.bf16.mxu0 %v1699
    %1882 = vmatpush1.bf16.msra.mxu0 %v1698
    %1883 = vmatprep.subr.bf16.mxu0 %v1702
    %1884 = vmatpush1.bf16.msra.mxu0 %v1701
    %1885 = vmatprep.subr.bf16.mxu0 %v1705
    %1886 = vmatpush1.bf16.msra.mxu0 %v1704
    %1887 = vmatprep.subr.bf16.mxu0 %v1708
    %1888 = vmatpush1.bf16.msra.mxu0 %v1707
    %1889 = vmatprep.subr.bf16.mxu0 %v1711
    %1890 = vmatpush1.bf16.msra.mxu0 %v1710
    %1891 = vmatprep.subr.bf16.mxu0 %v1714
    %1892 = vmatpush1.bf16.msra.mxu0 %v1713
    %1893 = vmatprep.subr.bf16.mxu0 %v1717
    %1894 = vmatpush1.bf16.msra.mxu0 %v1716
    %1895 = vmatprep.mubr.bf16.mxu0 %v1203
    %1896 = vmatmul.mubr.bf16.gmra.mrb[0].mxu0 %v1202
    %v1897 = vpop.f32.mrb[0].mxu0
    %v1898 = vadd.f32 %v1339, %v1897
    %v1899 = vpop.f32.mrb[0].mxu0
    %v1900 = vadd.f32 %v1343, %v1899
    %v1901 = vpop.f32.mrb[0].mxu0
    %v1902 = vpop.f32.mrb[0].mxu0
    %1903 = vdwg.mxu0
    %1904 = vmatprep.subr.bf16.mxu0 %v1720
    %1905 = vmatpush1.bf16.msra.mxu0 %v1719
    %1906 = vmatprep.subr.bf16.mxu0 %v1723
    %1907 = vmatpush1.bf16.msra.mxu0 %v1722
    %1908 = vmatprep.subr.bf16.mxu0 %v1726
    %1909 = vmatpush1.bf16.msra.mxu0 %v1725
    %1910 = vmatprep.subr.bf16.mxu0 %v1729
    %1911 = vmatpush1.bf16.msra.mxu0 %v1728
    %1912 = vmatprep.subr.bf16.mxu0 %v1732
    %1913 = vmatpush1.bf16.msra.mxu0 %v1731
    %1914 = vmatprep.subr.bf16.mxu0 %v1735
    %1915 = vmatpush1.bf16.msra.mxu0 %v1734
    %1916 = vmatprep.subr.bf16.mxu0 %v1738
    %1917 = vmatpush1.bf16.msra.mxu0 %v1737
    %1918 = vmatprep.subr.bf16.mxu0 %v1741
    %1919 = vmatpush1.bf16.msra.mxu0 %v1740
    %1920 = vmatprep.subr.bf16.mxu0 %v1744
    %1921 = vmatpush1.bf16.msra.mxu0 %v1743
    %1922 = vmatprep.subr.bf16.mxu0 %v1747
    %1923 = vmatpush1.bf16.msra.mxu0 %v1746
    %1924 = vmatprep.subr.bf16.mxu0 %v1750
    %1925 = vmatpush1.bf16.msra.mxu0 %v1749
    %1926 = vmatprep.subr.bf16.mxu0 %v1753
    %1927 = vmatpush1.bf16.msra.mxu0 %v1752
    %1928 = vmatprep.subr.bf16.mxu0 %v1756
    %1929 = vmatpush1.bf16.msra.mxu0 %v1755
    %1930 = vmatprep.subr.bf16.mxu0 %v1759
    %1931 = vmatpush1.bf16.msra.mxu0 %v1758
    %1932 = vmatprep.subr.bf16.mxu0 %v1762
    %1933 = vmatpush1.bf16.msra.mxu0 %v1761
    %1934 = vmatprep.subr.bf16.mxu0 %v1765
    %1935 = vmatpush1.bf16.msra.mxu0 %v1764
    %1936 = vmatprep.mubr.bf16.mxu0 %v1205
    %1937 = vmatmul.mubr.bf16.gmra.mrb[0].mxu0 %v1204
    %v1938 = vpop.f32.mrb[0].mxu0
    %v1939 = vadd.f32 %v1898, %v1938
    %v1940 = vpop.f32.mrb[0].mxu0
    %v1941 = vadd.f32 %v1900, %v1940
    %v1942 = vpop.f32.mrb[0].mxu0
    %v1943 = vpop.f32.mrb[0].mxu0
    %1944 = vdwg.mxu0
    %1945 = vmatprep.subr.bf16.mxu0 0
    %1946 = vmatpush1.bf16.msra.mxu0 %v1673
    %1947 = vmatprep.subr.bf16.mxu0 0
    %1948 = vmatpush1.bf16.msra.mxu0 %v1676
    %1949 = vmatprep.subr.bf16.mxu0 0
    %1950 = vmatpush1.bf16.msra.mxu0 %v1679
    %1951 = vmatprep.subr.bf16.mxu0 0
    %1952 = vmatpush1.bf16.msra.mxu0 %v1682
    %1953 = vmatprep.subr.bf16.mxu0 0
    %1954 = vmatpush1.bf16.msra.mxu0 %v1685
    %1955 = vmatprep.subr.bf16.mxu0 0
    %1956 = vmatpush1.bf16.msra.mxu0 %v1688
    %1957 = vmatprep.subr.bf16.mxu0 0
    %1958 = vmatpush1.bf16.msra.mxu0 %v1691
    %1959 = vmatprep.subr.bf16.mxu0 0
    %1960 = vmatpush1.bf16.msra.mxu0 %v1694
    %1961 = vmatprep.subr.bf16.mxu0 0
    %1962 = vmatpush1.bf16.msra.mxu0 %v1697
    %1963 = vmatprep.subr.bf16.mxu0 0
    %1964 = vmatpush1.bf16.msra.mxu0 %v1700
    %1965 = vmatprep.subr.bf16.mxu0 0
    %1966 = vmatpush1.bf16.msra.mxu0 %v1703
    %1967 = vmatprep.subr.bf16.mxu0 0
    %1968 = vmatpush1.bf16.msra.mxu0 %v1706
    %1969 = vmatprep.subr.bf16.mxu0 0
    %1970 = vmatpush1.bf16.msra.mxu0 %v1709
    %1971 = vmatprep.subr.bf16.mxu0 0
    %1972 = vmatpush1.bf16.msra.mxu0 %v1712
    %1973 = vmatprep.subr.bf16.mxu0 0
    %1974 = vmatpush1.bf16.msra.mxu0 %v1715
    %1975 = vmatprep.subr.bf16.mxu0 0
    %1976 = vmatpush1.bf16.msra.mxu0 %v1718
    %1977 = vmatprep.mubr.bf16.mxu0 %v1203
    %1978 = vmatmul.mubr.bf16.gmra.mrb[0].mxu0 %v1202
    %v1979 = vpop.f32.mrb[0].mxu0
    %v1980 = vadd.f32 %v1347, %v1979
    %v1981 = vpop.f32.mrb[0].mxu0
    %v1982 = vpop.f32.mrb[0].mxu0
    %v1983 = vpop.f32.mrb[0].mxu0
    %1984 = vdwg.mxu0
    %1985 = vmatprep.subr.bf16.mxu0 0
    %1986 = vmatpush1.bf16.msra.mxu0 %v1721
    %1987 = vmatprep.subr.bf16.mxu0 0
    %1988 = vmatpush1.bf16.msra.mxu0 %v1724
    %1989 = vmatprep.subr.bf16.mxu0 0
    %1990 = vmatpush1.bf16.msra.mxu0 %v1727
    %1991 = vmatprep.subr.bf16.mxu0 0
    %1992 = vmatpush1.bf16.msra.mxu0 %v1730
    %1993 = vmatprep.subr.bf16.mxu0 0
    %1994 = vmatpush1.bf16.msra.mxu0 %v1733
    %1995 = vmatprep.subr.bf16.mxu0 0
    %1996 = vmatpush1.bf16.msra.mxu0 %v1736
    %1997 = vmatprep.subr.bf16.mxu0 0
    %1998 = vmatpush1.bf16.msra.mxu0 %v1739
    %1999 = vmatprep.subr.bf16.mxu0 0
    %2000 = vmatpush1.bf16.msra.mxu0 %v1742
    %2001 = vmatprep.subr.bf16.mxu0 0
    %2002 = vmatpush1.bf16.msra.mxu0 %v1745
    %2003 = vmatprep.subr.bf16.mxu0 0
    %2004 = vmatpush1.bf16.msra.mxu0 %v1748
    %2005 = vmatprep.subr.bf16.mxu0 0
    %2006 = vmatpush1.bf16.msra.mxu0 %v1751
    %2007 = vmatprep.subr.bf16.mxu0 0
    %2008 = vmatpush1.bf16.msra.mxu0 %v1754
    %2009 = vmatprep.subr.bf16.mxu0 0
    %2010 = vmatpush1.bf16.msra.mxu0 %v1757
    %2011 = vmatprep.subr.bf16.mxu0 0
    %2012 = vmatpush1.bf16.msra.mxu0 %v1760
    %2013 = vmatprep.subr.bf16.mxu0 0
    %2014 = vmatpush1.bf16.msra.mxu0 %v1763
    %2015 = vmatprep.subr.bf16.mxu0 0
    %2016 = vmatpush1.bf16.msra.mxu0 %v1766
    %2017 = vmatprep.mubr.bf16.mxu0 %v1205
    %2018 = vmatmul.mubr.bf16.gmra.mrb[0].mxu0 %v1204
    %v2019 = vpop.f32.mrb[0].mxu0
    %v2020 = vadd.f32 %v1980, %v2019
    %v2021 = vpop.f32.mrb[0].mxu0
    %v2022 = vpop.f32.mrb[0].mxu0
    %v2023 = vpop.f32.mrb[0].mxu0
    %2024 = vdwg.mxu0
    %v2025 = vmax.f32 %v1939, 0.0
    %v2026 = vmax.f32 %v1941, 0.0
    %v2027 = vmax.f32 %v2020, 0.0
    %v2028 = vpack.c.bf16 %v2025, %v2025
    %v2029 = vpack.c.bf16 %v2026, %v2026
    %v2030 = vpack.c.bf16 %v2027, %v2027
    %v2031 = vld [vmem:[#allocation8] sm:$0xf]
    %v2032 = vld [vmem:[#allocation8 + $0x4] sm:$0xf]
    %v2033 = vld [vmem:[#allocation8 + $0x8] sm:$0xf]
    %v2034 = vld [vmem:[#allocation8 + $0xc] sm:$0xf]
    %v2035 = vld [vmem:[#allocation8 + $0x10] sm:$0xf]
    %v2036 = vld [vmem:[#allocation8 + $0x14] sm:$0xf]
    %v2037 = vld [vmem:[#allocation8 + $0x18] sm:$0xf]
    %v2038 = vld [vmem:[#allocation8 + $0x1c] sm:$0xf]
    %v2039 = vld [vmem:[#allocation8 + $0x20] sm:$0xf]
    %v2040 = vld [vmem:[#allocation8 + $0x24] sm:$0xf]
    %v2041 = vld [vmem:[#allocation8 + $0x28] sm:$0xf]
    %v2042 = vld [vmem:[#allocation8 + $0x2c] sm:$0xf]
    %v2043 = vld [vmem:[#allocation8 + $0x30] sm:$0xf]
    %v2044 = vld [vmem:[#allocation8 + $0x34] sm:$0xf]
    %v2045 = vld [vmem:[#allocation8 + $0x38] sm:$0xf]
    %v2046 = vld [vmem:[#allocation8 + $0x3c] sm:$0xf]
    %v2047 = vld [vmem:[#allocation8 + $0x40] sm:$0xf]
    %v2048 = vld [vmem:[#allocation8 + $0x44] sm:$0xf]
    %v2049 = vld [vmem:[#allocation8 + $0x48] sm:$0xf]
    %v2050 = vld [vmem:[#allocation8 + $0x4c] sm:$0xf]
    %v2051 = vld [vmem:[#allocation8 + $0x50] sm:$0xf]
    %v2052 = vld [vmem:[#allocation8 + $0x54] sm:$0xf]
    %v2053 = vld [vmem:[#allocation8 + $0x58] sm:$0xf]
    %v2054 = vld [vmem:[#allocation8 + $0x5c] sm:$0xf]
    %v2055 = vld [vmem:[#allocation8 + $0x60] sm:$0xf]
    %v2056 = vld [vmem:[#allocation8 + $0x64] sm:$0xf]
    %v2057 = vld [vmem:[#allocation8 + $0x68] sm:$0xf]
    %v2058 = vld [vmem:[#allocation8 + $0x6c] sm:$0xf]
    %v2059 = vld [vmem:[#allocation8 + $0x70] sm:$0xf]
    %v2060 = vld [vmem:[#allocation8 + $0x74] sm:$0xf]
    %v2061 = vld [vmem:[#allocation8 + $0x78] sm:$0xf]
    %v2062 = vld [vmem:[#allocation8 + $0x7c] sm:$0xf]
    %v2063 = vld [vmem:[#allocation8 + $0x80] sm:$0xf]
    %v2064 = vld [vmem:[#allocation8 + $0x84] sm:$0xf]
    %v2065 = vld [vmem:[#allocation8 + $0x88] sm:$0xf]
    %v2066 = vld [vmem:[#allocation8 + $0x8c] sm:$0xf]
    %v2067 = vld [vmem:[#allocation8 + $0x90] sm:$0xf]
    %v2068 = vld [vmem:[#allocation8 + $0x94] sm:$0xf]
    %v2069 = vld [vmem:[#allocation8 + $0x98] sm:$0xf]
    %v2070 = vld [vmem:[#allocation8 + $0x9c] sm:$0xf]
    %v2071 = vld [vmem:[#allocation8 + $0xa0] sm:$0xf]
    %v2072 = vld [vmem:[#allocation8 + $0xa4] sm:$0xf]
    %v2073 = vld [vmem:[#allocation8 + $0xa8] sm:$0xf]
    %v2074 = vld [vmem:[#allocation8 + $0xac] sm:$0xf]
    %v2075 = vld [vmem:[#allocation8 + $0xb0] sm:$0xf]
    %v2076 = vld [vmem:[#allocation8 + $0xb4] sm:$0xf]
    %v2077 = vld [vmem:[#allocation8 + $0xb8] sm:$0xf]
    %v2078 = vld [vmem:[#allocation8 + $0xbc] sm:$0xf]
    %v2079 = vld [vmem:[#allocation10] sm:$0x1]
    %v2081 = vlaneseq
    %v2082 = vshrl.u32 %v2081, 7
    %v2083 = vsub.s32 0, %v2082
    %v2084 = vrot.slane %v2079, %v2083
    %v2134 = vunpack.c.l.b16 %v2031
    %v2135 = vunpack.c.l.b16 %v2032
    %v2136 = vunpack.c.l.b16 %v2033
    %v2137 = vunpack.c.l.b16 %v2034
    %v2138 = vunpack.c.l.b16 %v2035
    %v2139 = vunpack.c.l.b16 %v2036
    %v2140 = vunpack.c.l.b16 %v2037
    %v2141 = vunpack.c.l.b16 %v2038
    %v2142 = vunpack.c.l.b16 %v2039
    %v2143 = vunpack.c.l.b16 %v2040
    %v2144 = vunpack.c.l.b16 %v2041
    %v2145 = vunpack.c.l.b16 %v2042
    %v2146 = vunpack.c.l.b16 %v2043
    %v2147 = vunpack.c.l.b16 %v2044
    %v2148 = vunpack.c.l.b16 %v2045
    %v2149 = vunpack.c.l.b16 %v2046
    %v2150 = vunpack.c.l.b16 %v2047
    %v2151 = vunpack.c.l.b16 %v2048
    %v2152 = vunpack.c.l.b16 %v2049
    %v2153 = vunpack.c.l.b16 %v2050
    %v2154 = vunpack.c.l.b16 %v2051
    %v2155 = vunpack.c.l.b16 %v2052
    %v2156 = vunpack.c.l.b16 %v2053
    %v2157 = vunpack.c.l.b16 %v2054
    %v2158 = vunpack.c.l.b16 %v2055
    %v2159 = vunpack.c.l.b16 %v2056
    %v2160 = vunpack.c.l.b16 %v2057
    %v2161 = vunpack.c.l.b16 %v2058
    %v2162 = vunpack.c.l.b16 %v2059
    %v2163 = vunpack.c.l.b16 %v2060
    %v2164 = vunpack.c.l.b16 %v2061
    %v2165 = vunpack.c.l.b16 %v2062
    %v2166 = vunpack.c.l.b16 %v2063
    %v2167 = vunpack.c.l.b16 %v2064
    %v2168 = vunpack.c.l.b16 %v2065
    %v2169 = vunpack.c.l.b16 %v2066
    %v2170 = vunpack.c.l.b16 %v2067
    %v2171 = vunpack.c.l.b16 %v2068
    %v2172 = vunpack.c.l.b16 %v2069
    %v2173 = vunpack.c.l.b16 %v2070
    %v2174 = vunpack.c.l.b16 %v2071
    %v2175 = vunpack.c.l.b16 %v2072
    %v2176 = vunpack.c.l.b16 %v2073
    %v2177 = vunpack.c.l.b16 %v2074
    %v2178 = vunpack.c.l.b16 %v2075
    %v2179 = vunpack.c.l.b16 %v2076
    %v2180 = vunpack.c.l.b16 %v2077
    %v2181 = vunpack.c.l.b16 %v2078
    %v2182 = vpack.c.b16 %v2135, %v2134
    %v2183 = vpack.c.b16 %v2137, %v2136
    %v2184 = vpack.c.b16 %v2139, %v2138
    %v2185 = vpack.c.b16 %v2141, %v2140
    %v2186 = vpack.c.b16 %v2143, %v2142
    %v2187 = vpack.c.b16 %v2145, %v2144
    %v2188 = vpack.c.b16 %v2147, %v2146
    %v2189 = vpack.c.b16 %v2149, %v2148
    %v2190 = vpack.c.b16 %v2151, %v2150
    %v2191 = vpack.c.b16 %v2153, %v2152
    %v2192 = vpack.c.b16 %v2155, %v2154
    %v2193 = vpack.c.b16 %v2157, %v2156
    %v2194 = vpack.c.b16 %v2159, %v2158
    %v2195 = vpack.c.b16 %v2161, %v2160
    %v2196 = vpack.c.b16 %v2163, %v2162
    %v2197 = vpack.c.b16 %v2165, %v2164
    %v2198 = vpack.c.b16 %v2167, %v2166
    %v2199 = vpack.c.b16 %v2169, %v2168
    %v2200 = vpack.c.b16 %v2171, %v2170
    %v2201 = vpack.c.b16 %v2173, %v2172
    %v2202 = vpack.c.b16 %v2175, %v2174
    %v2203 = vpack.c.b16 %v2177, %v2176
    %v2204 = vpack.c.b16 %v2179, %v2178
    %v2205 = vpack.c.b16 %v2181, %v2180
    %2230 = vmatprep.subr.bf16.mxu0 0
    %2231 = vmatpush1.bf16.msra.mxu0 %v2182
    %2232 = vmatprep.subr.bf16.mxu0 0
    %2233 = vmatpush1.bf16.msra.mxu0 %v2183
    %2234 = vmatprep.subr.bf16.mxu0 0
    %2235 = vmatpush1.bf16.msra.mxu0 %v2184
    %2236 = vmatprep.subr.bf16.mxu0 0
    %2237 = vmatpush1.bf16.msra.mxu0 %v2185
    %2238 = vmatprep.subr.bf16.mxu0 0
    %2239 = vmatpush1.bf16.msra.mxu0 %v2186
    %2240 = vmatprep.subr.bf16.mxu0 0
    %2241 = vmatpush1.bf16.msra.mxu0 %v2187
    %2242 = vmatprep.subr.bf16.mxu0 0
    %2243 = vmatpush1.bf16.msra.mxu0 %v2188
    %2244 = vmatprep.subr.bf16.mxu0 0
    %2245 = vmatpush1.bf16.msra.mxu0 %v2189
    %2246 = vmatprep.subr.bf16.mxu0 0
    %2247 = vmatpush1.bf16.msra.mxu0 %v2190
    %2248 = vmatprep.subr.bf16.mxu0 0
    %2249 = vmatpush1.bf16.msra.mxu0 %v2191
    %2250 = vmatprep.subr.bf16.mxu0 0
    %2251 = vmatpush1.bf16.msra.mxu0 %v2192
    %2252 = vmatprep.subr.bf16.mxu0 0
    %2253 = vmatpush1.bf16.msra.mxu0 %v2193
    %2254 = vmatprep.subr.bf16.mxu0 0
    %2255 = vmatpush1.bf16.msra.mxu0 %v2194
    %2256 = vmatprep.subr.bf16.mxu0 0
    %2257 = vmatpush1.bf16.msra.mxu0 %v2195
    %2258 = vmatprep.subr.bf16.mxu0 0
    %2259 = vmatpush1.bf16.msra.mxu0 %v2196
    %2260 = vmatprep.subr.bf16.mxu0 0
    %2261 = vmatpush1.bf16.msra.mxu0 %v2197
    %2262 = vmatprep.mubr.bf16.mxu0 %v2029
    %2263 = vmatmul.mubr.bf16.gmra.mrb[0].mxu0 %v2028
    %v2264 = vpop.f32.mrb[0].mxu0
    %v2265 = vadd.f32 %v2084, %v2264
    %v2266 = vpop.f32.mrb[0].mxu0
    %v2267 = vpop.f32.mrb[0].mxu0
    %v2268 = vpop.f32.mrb[0].mxu0
    %2269 = vdwg.mxu0
    %2270 = vmatprep.subr.bf16.mxu0 0
    %2271 = vmatpush1.bf16.msra.mxu0 %v2198
    %2272 = vmatprep.subr.bf16.mxu0 0
    %2273 = vmatpush1.bf16.msra.mxu0 %v2199
    %2274 = vmatprep.subr.bf16.mxu0 0
    %2275 = vmatpush1.bf16.msra.mxu0 %v2200
    %2276 = vmatprep.subr.bf16.mxu0 0
    %2277 = vmatpush1.bf16.msra.mxu0 %v2201
    %2278 = vmatprep.subr.bf16.mxu0 0
    %2279 = vmatpush1.bf16.msra.mxu0 %v2202
    %2280 = vmatprep.subr.bf16.mxu0 0
    %2281 = vmatpush1.bf16.msra.mxu0 %v2203
    %2282 = vmatprep.subr.bf16.mxu0 0
    %2283 = vmatpush1.bf16.msra.mxu0 %v2204
    %2284 = vmatprep.subr.bf16.mxu0 0
    %2285 = vmatpush1.bf16.msra.mxu0 %v2205
    %2286 = vmatprep.subr.bf16.mxu0 0
    %2287 = vmatpush1.bf16.msra.mxu0 0
    %2288 = vmatprep.subr.bf16.mxu0 0
    %2289 = vmatpush1.bf16.msra.mxu0 0
    %2290 = vmatprep.subr.bf16.mxu0 0
    %2291 = vmatpush1.bf16.msra.mxu0 0
    %2292 = vmatprep.subr.bf16.mxu0 0
    %2293 = vmatpush1.bf16.msra.mxu0 0
    %2294 = vmatprep.subr.bf16.mxu0 0
    %2295 = vmatpush1.bf16.msra.mxu0 0
    %2296 = vmatprep.subr.bf16.mxu0 0
    %2297 = vmatpush1.bf16.msra.mxu0 0
    %2298 = vmatprep.subr.bf16.mxu0 0
    %2299 = vmatpush1.bf16.msra.mxu0 0
    %2300 = vmatprep.subr.bf16.mxu0 0
    %2301 = vmatpush1.bf16.msra.mxu0 0
    %2302 = vmatprep.mubr.bf16.mxu0 0
    %2303 = vmatmul.mubr.bf16.gmra.mrb[0].mxu0 %v2030
    %v2304 = vpop.f32.mrb[0].mxu0
    %v2305 = vadd.f32 %v2265, %v2304
    %v2306 = vpop.f32.mrb[0].mxu0
    %v2307 = vpop.f32.mrb[0].mxu0
    %v2308 = vpop.f32.mrb[0].mxu0
    %2309 = vdwg.mxu0
    %v2310 = vtanh.pop %v2305
    %v2311 = vstv %s101
    %v2312 = vmul.f32 %v2311, %v2310
    %2313 = vst [vmem:[%s10] sm:$0xff] %v2312
    // Predicated region
    $region62: #{actor_net_apply.1} parent=1 // pred_check
      _
    $region63: #{actor_net_apply.1} parent=1 // pred_check_branch
      %2315 = sbr.rel (0) target = $region65
    $region64: #{actor_net_apply.1} parent=1 // pred_region
      _
    $region65: #{actor_net_apply.1} parent=1 // pred_fallthru
      _
    // Predicated region
    $region66: #{actor_net_apply.1} parent=1 // pred_check
      _
    $region67: #{actor_net_apply.1} parent=1 // pred_check_branch
      %2317 = sbr.rel (0) target = $region69
    $region68: #{actor_net_apply.1} parent=1 // pred_region
      _
    $region69: #{actor_net_apply.1} parent=1 // pred_fallthru
      _
    %2318 = vsyncpa [#allocation4], 1
    %2319 = vsyncpa [#allocation6], 1
    %2320 = vsyncpa [#allocation9], 1

</llo_original>
